<compile_context>
chip_gen: v7x
topology: tpu7x:2x2x1
jax: 0.10.0
libtpu: 0.0.40
codegen_flags: <defaults>
</compile_context>

<pallas_src>
import functools

import jax
import jax.numpy as jnp
from jax import lax
from jax.experimental import pallas as pl
from jax.experimental.pallas import tpu as pltpu

# ----- config (stand-in for the original `Config`) -----
CONFIG_RADIUS = 3                       # neighborhood radius
CONFIG_K = 4                            # number of classes (added at the end: K - assoc)
D = 2 * (CONFIG_RADIUS - 1) + 1         # neighborhood diameter (5)


def _ncuts_kernel(seg_ref, pseg_ref, wt_ref, out_ref, *, K, H, W, d, sh, k_const):
    """One batch element per grid step (batch axis is megacore-parallel).

    seg_ref  : (1, K, H, W)           VMEM f32
    pseg_ref : (1, K, H+d-1, W+d-1)   VMEM f32
    wt_ref   : (1, d, d, H, W)        VMEM bf16 (upcast per tap to f32)
    out_ref  : (1, 1, 128)            VMEM f32 (loss broadcast over lanes; wrapper reads [:,0,0])
    """
    num_strips = H // sh

    def strip_body(s, carry):
        assoc_a, assoc_v = carry                       # (K, 1) f32 each
        row0 = pl.multiple_of(s * sh, sh)              # sublane-aligned strip start

        # Strip of padded seg with its (d-1)-row halo, loaded once per strip.
        pseg_strip = pseg_ref[0, :, pl.ds(row0, sh + d - 1), :]      # (K, sh+d-1, W+d-1)

        # Register-blocked accumulators: stay in vregs across all d*d taps,
        # never round-trip VMEM inside the tap loop.
        acc = jnp.zeros((K, sh, W), jnp.float32)
        swt = jnp.zeros((sh, W), jnp.float32)          # in-kernel sum_weight

        # n (lane offset) in the OUTER position: one cross-lane shift per n (d total),
        # reused for all d sublane offsets m.  Each weight tap is loaded once (bf16 ->
        # f32 right after load, v5e-safe) and shared by all K class planes.
        for n in range(d):
            pseg_n = pseg_strip[:, :, n:n + W]                        # (K, sh+d-1, W)
            for m in range(d):
                w_mn = wt_ref[0, m, n, pl.ds(row0, sh), :].astype(jnp.float32)  # (sh, W)
                win = pseg_n[:, m:m + sh, :]                          # (K, sh, W) sublane offset
                acc = acc + win * w_mn[None, :, :]
                swt = swt + w_mn

        seg_strip = seg_ref[0, :, pl.ds(row0, sh), :]                 # (K, sh, W)
        num = acc * seg_strip
        den = swt[None, :, :] * seg_strip
        assoc_a = assoc_a + jnp.sum(jnp.sum(num, axis=-1), axis=-1, keepdims=True)  # (K, 1)
        assoc_v = assoc_v + jnp.sum(jnp.sum(den, axis=-1), axis=-1, keepdims=True)  # (K, 1)
        return assoc_a, assoc_v

    init = (jnp.zeros((K, 1), jnp.float32), jnp.zeros((K, 1), jnp.float32))
    assoc_a, assoc_v = lax.fori_loop(0, num_strips, strip_body, init)

    loss = k_const - jnp.sum(assoc_a / assoc_v)
    out_ref[...] = jnp.full((1, 1, 128), loss, dtype=jnp.float32)


def ncuts_loss(seg, padded_seg, weight, radius=CONFIG_RADIUS, k_const=CONFIG_K):
    """seg: (N,K,H,W) f32; padded_seg: (N,K,H+d-1,W+d-1) f32; weight: (N,d,d,H,W) bf16/f32.

    sum_weight is computed inside the kernel (= sum of the d*d taps), so it is not an input.
    """
    N, K, H, W = seg.shape
    d = 2 * (radius - 1) + 1
    assert padded_seg.shape == (N, K, H + d - 1, W + d - 1)
    assert weight.shape == (N, d, d, H, W)

    # 8-row (sublane-aligned) register-blocking strips; fall back to a single strip
    # if H is not a multiple of 8.
    sh = 8 if H % 8 == 0 else H

    kernel = functools.partial(_ncuts_kernel, K=K, H=H, W=W, d=d, sh=sh,
                               k_const=float(k_const))

    out = pl.pallas_call(
        kernel,
        out_shape=jax.ShapeDtypeStruct((N, 1, 128), jnp.float32),
        grid=(N,),
        in_specs=[
            pl.BlockSpec((1, K, H, W), lambda b: (b, 0, 0, 0)),
            pl.BlockSpec((1, K, H + d - 1, W + d - 1), lambda b: (b, 0, 0, 0)),
            pl.BlockSpec((1, d, d, H, W), lambda b: (b, 0, 0, 0, 0)),
        ],
        # Each grid step owns its own (1, 1, 128) output block -> safe under
        # "parallel" batch semantics (v7x megacore sharding).
        out_specs=pl.BlockSpec((1, 1, 128), lambda b: (b, 0, 0)),
        compiler_params=pltpu.CompilerParams(
            dimension_semantics=("parallel",),
            vmem_limit_bytes=64 * 1024 * 1024),
    )(seg, padded_seg, weight)

    return out[:, 0, 0]


def ncuts_loss_ref(seg, padded_seg, weight, sum_weight,
                   radius=CONFIG_RADIUS, k_const=CONFIG_K):
    """Pure-JAX transcription of the PyTorch forward (PyTorch weight layout) for verification."""
    N, K, H, W = seg.shape
    d = 2 * (radius - 1) + 1
    cols = []
    for m in range(d):
        col = [padded_seg[:, :, m:m + H, n:n + W] for n in range(d)]
        cols.append(jnp.stack(col, axis=4))
    cropped = jnp.stack(cols, axis=4)                    # (N, K, H, W, m, n)
    multi1 = cropped * weight
    multi2 = multi1.sum(-1).sum(-1) * seg
    multi3 = sum_weight * seg
    assocA = multi2.reshape(N, K, -1).sum(-1)
    assocV = multi3.reshape(N, K, -1).sum(-1)
    assoc = (assocA / assocV).sum(-1)
    return -assoc + k_const


if __name__ == "__main__":
    N, K, H, W = 2, CONFIG_K, 16, 16
    d = D
    pad = CONFIG_RADIUS - 1

    key = jax.random.PRNGKey(0)
    k_seg, k_w = jax.random.split(key)

    # seg: softmax over classes (as the W-Net encoder would produce)
    logits = jax.random.normal(k_seg, (N, K, H, W), dtype=jnp.float32)
    seg = jax.nn.softmax(logits, axis=1)
    padded_seg = jnp.pad(seg, ((0, 0), (0, 0), (pad, pad), (pad, pad)))

    # Affinity weights produced directly in the kernel layout (N, d, d, H, W),
    # stored as bf16 for the HBM->VMEM transfer (kernel upcasts and accumulates in f32).
    w_f32 = jax.random.uniform(k_w, (N, d, d, H, W), dtype=jnp.float32,
                               minval=0.1, maxval=1.0)
    weight = w_f32.astype(jnp.bfloat16)

    out = ncuts_loss(seg, padded_seg, weight)
    out = jax.block_until_ready(out)

    # Reference in the original PyTorch layout, fed the same bf16-rounded weights.
    w_ref = jnp.transpose(weight.astype(jnp.float32), (0, 3, 4, 1, 2))[:, None]  # (N,1,H,W,d,d)
    sum_weight = w_ref.sum(axis=(-1, -2))                                        # (N,1,H,W)
    ref = ncuts_loss_ref(seg, padded_seg, w_ref, sum_weight)

    assert out.shape == (N,)
    assert jnp.allclose(out, ref, rtol=1e-3, atol=1e-3), (out, ref)

    print("KERNEL_OK")
</pallas_src>

<mosaic_0001>
module attributes {stable_mosaic.version = 11 : i64} {
  func.func @_ncuts_kernel(%arg0: i32, %arg1: memref<1x4x16x16xf32, #tpu.memory_space<vmem>>, %arg2: memref<1x4x20x20xf32, #tpu.memory_space<vmem>>, %arg3: memref<1x5x5x16x16xbf16, #tpu.memory_space<vmem>>, %arg4: memref<1x1x128xf32, #tpu.memory_space<vmem>>) attributes {dimension_semantics = [#tpu.dimension_semantics<parallel>], iteration_bounds = array<i64: 2>, scalar_prefetch = 0 : i64, scratch_operands = 0 : i64, tpu.core_type = #tpu.core_type<tc>, window_params = [{transform_indices = @transform_0, window_bounds = array<i64: 1, 4, 16, 16>}, {transform_indices = @transform_1, window_bounds = array<i64: 1, 4, 20, 20>}, {transform_indices = @transform_2, window_bounds = array<i64: 1, 5, 5, 16, 16>}, {transform_indices = @transform_3, window_bounds = array<i64: 1, 1, 128>}]} {
    %cst = arith.constant 0.000000e+00 : f32
    %0 = vector.broadcast %cst : f32 to vector<4x1xf32>
    %cst_0 = arith.constant 0.000000e+00 : f32
    %1 = vector.broadcast %cst_0 : f32 to vector<4x1xf32>
    %c0_i32 = arith.constant 0 : i32
    %c2_i32 = arith.constant 2 : i32
    %2 = arith.addi %c0_i32, %c2_i32 : i32
    %c1_i32 = arith.constant 1 : i32
    %3:2 = scf.for %arg5 = %c0_i32 to %2 step %c1_i32 iter_args(%arg6 = %0, %arg7 = %1) -> (vector<4x1xf32>, vector<4x1xf32>)  : i32 {
      %c8_i32 = arith.constant 8 : i32
      %12 = arith.muli %arg5, %c8_i32 : i32
      %13 = tpu.assume_multiple %12, 8 : i32
      %c0_6 = arith.constant 0 : index
      %c0_7 = arith.constant 0 : index
      %14 = arith.index_cast %13 : i32 to index
      %c0_8 = arith.constant 0 : index
      %15 = vector.load %arg2[%c0_6, %c0_7, %14, %c0_8] : memref<1x4x20x20xf32, #tpu.memory_space<vmem>>, vector<1x4x12x20xf32>
      %16 = vector.shape_cast %15 : vector<1x4x12x20xf32> to vector<4x12x20xf32>
      %cst_9 = arith.constant 0.000000e+00 : f32
      %17 = vector.broadcast %cst_9 : f32 to vector<4x8x16xf32>
      %cst_10 = arith.constant 0.000000e+00 : f32
      %18 = vector.broadcast %cst_10 : f32 to vector<8x16xf32>
      %19 = vector.extract_strided_slice %16 {offsets = [0, 0, 0], sizes = [4, 12, 16], strides = [1, 1, 1]} : vector<4x12x20xf32> to vector<4x12x16xf32>
      %c0_11 = arith.constant 0 : index
      %c0_12 = arith.constant 0 : index
      %c0_13 = arith.constant 0 : index
      %20 = arith.index_cast %13 : i32 to index
      %c0_14 = arith.constant 0 : index
      %21 = vector.load %arg3[%c0_11, %c0_12, %c0_13, %20, %c0_14] : memref<1x5x5x16x16xbf16, #tpu.memory_space<vmem>>, vector<1x1x1x8x16xbf16>
      %22 = vector.shape_cast %21 : vector<1x1x1x8x16xbf16> to vector<8x16xbf16>
      %23 = arith.extf %22 : vector<8x16xbf16> to vector<8x16xf32>
      %24 = vector.extract_strided_slice %19 {offsets = [0, 0, 0], sizes = [4, 8, 16], strides = [1, 1, 1]} : vector<4x12x16xf32> to vector<4x8x16xf32>
      %25 = vector.shape_cast %23 : vector<8x16xf32> to vector<1x8x16xf32>
      %26 = vector.broadcast %25 : vector<1x8x16xf32> to vector<4x8x16xf32>
      %27 = arith.mulf %24, %26 : vector<4x8x16xf32>
      %28 = arith.addf %17, %27 : vector<4x8x16xf32>
      %29 = arith.addf %18, %23 : vector<8x16xf32>
      %c0_15 = arith.constant 0 : index
      %c1 = arith.constant 1 : index
      %c0_16 = arith.constant 0 : index
      %30 = arith.index_cast %13 : i32 to index
      %c0_17 = arith.constant 0 : index
      %31 = vector.load %arg3[%c0_15, %c1, %c0_16, %30, %c0_17] : memref<1x5x5x16x16xbf16, #tpu.memory_space<vmem>>, vector<1x1x1x8x16xbf16>
      %32 = vector.shape_cast %31 : vector<1x1x1x8x16xbf16> to vector<8x16xbf16>
      %33 = arith.extf %32 : vector<8x16xbf16> to vector<8x16xf32>
      %34 = vector.extract_strided_slice %19 {offsets = [0, 1, 0], sizes = [4, 8, 16], strides = [1, 1, 1]} : vector<4x12x16xf32> to vector<4x8x16xf32>
      %35 = vector.shape_cast %33 : vector<8x16xf32> to vector<1x8x16xf32>
      %36 = vector.broadcast %35 : vector<1x8x16xf32> to vector<4x8x16xf32>
      %37 = arith.mulf %34, %36 : vector<4x8x16xf32>
      %38 = arith.addf %28, %37 : vector<4x8x16xf32>
      %39 = arith.addf %29, %33 : vector<8x16xf32>
      %c0_18 = arith.constant 0 : index
      %c2 = arith.constant 2 : index
      %c0_19 = arith.constant 0 : index
      %40 = arith.index_cast %13 : i32 to index
      %c0_20 = arith.constant 0 : index
      %41 = vector.load %arg3[%c0_18, %c2, %c0_19, %40, %c0_20] : memref<1x5x5x16x16xbf16, #tpu.memory_space<vmem>>, vector<1x1x1x8x16xbf16>
      %42 = vector.shape_cast %41 : vector<1x1x1x8x16xbf16> to vector<8x16xbf16>
      %43 = arith.extf %42 : vector<8x16xbf16> to vector<8x16xf32>
      %44 = vector.extract_strided_slice %19 {offsets = [0, 2, 0], sizes = [4, 8, 16], strides = [1, 1, 1]} : vector<4x12x16xf32> to vector<4x8x16xf32>
      %45 = vector.shape_cast %43 : vector<8x16xf32> to vector<1x8x16xf32>
      %46 = vector.broadcast %45 : vector<1x8x16xf32> to vector<4x8x16xf32>
      %47 = arith.mulf %44, %46 : vector<4x8x16xf32>
      %48 = arith.addf %38, %47 : vector<4x8x16xf32>
      %49 = arith.addf %39, %43 : vector<8x16xf32>
      %c0_21 = arith.constant 0 : index
      %c3 = arith.constant 3 : index
      %c0_22 = arith.constant 0 : index
      %50 = arith.index_cast %13 : i32 to index
      %c0_23 = arith.constant 0 : index
      %51 = vector.load %arg3[%c0_21, %c3, %c0_22, %50, %c0_23] : memref<1x5x5x16x16xbf16, #tpu.memory_space<vmem>>, vector<1x1x1x8x16xbf16>
      %52 = vector.shape_cast %51 : vector<1x1x1x8x16xbf16> to vector<8x16xbf16>
      %53 = arith.extf %52 : vector<8x16xbf16> to vector<8x16xf32>
      %54 = vector.extract_strided_slice %19 {offsets = [0, 3, 0], sizes = [4, 8, 16], strides = [1, 1, 1]} : vector<4x12x16xf32> to vector<4x8x16xf32>
      %55 = vector.shape_cast %53 : vector<8x16xf32> to vector<1x8x16xf32>
      %56 = vector.broadcast %55 : vector<1x8x16xf32> to vector<4x8x16xf32>
      %57 = arith.mulf %54, %56 : vector<4x8x16xf32>
      %58 = arith.addf %48, %57 : vector<4x8x16xf32>
      %59 = arith.addf %49, %53 : vector<8x16xf32>
      %c0_24 = arith.constant 0 : index
      %c4 = arith.constant 4 : index
      %c0_25 = arith.constant 0 : index
      %60 = arith.index_cast %13 : i32 to index
      %c0_26 = arith.constant 0 : index
      %61 = vector.load %arg3[%c0_24, %c4, %c0_25, %60, %c0_26] : memref<1x5x5x16x16xbf16, #tpu.memory_space<vmem>>, vector<1x1x1x8x16xbf16>
      %62 = vector.shape_cast %61 : vector<1x1x1x8x16xbf16> to vector<8x16xbf16>
      %63 = arith.extf %62 : vector<8x16xbf16> to vector<8x16xf32>
      %64 = vector.extract_strided_slice %19 {offsets = [0, 4, 0], sizes = [4, 8, 16], strides = [1, 1, 1]} : vector<4x12x16xf32> to vector<4x8x16xf32>
      %65 = vector.shape_cast %63 : vector<8x16xf32> to vector<1x8x16xf32>
      %66 = vector.broadcast %65 : vector<1x8x16xf32> to vector<4x8x16xf32>
      %67 = arith.mulf %64, %66 : vector<4x8x16xf32>
      %68 = arith.addf %58, %67 : vector<4x8x16xf32>
      %69 = arith.addf %59, %63 : vector<8x16xf32>
      %70 = vector.extract_strided_slice %16 {offsets = [0, 0, 1], sizes = [4, 12, 16], strides = [1, 1, 1]} : vector<4x12x20xf32> to vector<4x12x16xf32>
      %c0_27 = arith.constant 0 : index
      %c0_28 = arith.constant 0 : index
      %c1_29 = arith.constant 1 : index
      %71 = arith.index_cast %13 : i32 to index
      %c0_30 = arith.constant 0 : index
      %72 = vector.load %arg3[%c0_27, %c0_28, %c1_29, %71, %c0_30] : memref<1x5x5x16x16xbf16, #tpu.memory_space<vmem>>, vector<1x1x1x8x16xbf16>
      %73 = vector.shape_cast %72 : vector<1x1x1x8x16xbf16> to vector<8x16xbf16>
      %74 = arith.extf %73 : vector<8x16xbf16> to vector<8x16xf32>
      %75 = vector.extract_strided_slice %70 {offsets = [0, 0, 0], sizes = [4, 8, 16], strides = [1, 1, 1]} : vector<4x12x16xf32> to vector<4x8x16xf32>
      %76 = vector.shape_cast %74 : vector<8x16xf32> to vector<1x8x16xf32>
      %77 = vector.broadcast %76 : vector<1x8x16xf32> to vector<4x8x16xf32>
      %78 = arith.mulf %75, %77 : vector<4x8x16xf32>
      %79 = arith.addf %68, %78 : vector<4x8x16xf32>
      %80 = arith.addf %69, %74 : vector<8x16xf32>
      %c0_31 = arith.constant 0 : index
      %c1_32 = arith.constant 1 : index
      %c1_33 = arith.constant 1 : index
      %81 = arith.index_cast %13 : i32 to index
      %c0_34 = arith.constant 0 : index
      %82 = vector.load %arg3[%c0_31, %c1_32, %c1_33, %81, %c0_34] : memref<1x5x5x16x16xbf16, #tpu.memory_space<vmem>>, vector<1x1x1x8x16xbf16>
      %83 = vector.shape_cast %82 : vector<1x1x1x8x16xbf16> to vector<8x16xbf16>
      %84 = arith.extf %83 : vector<8x16xbf16> to vector<8x16xf32>
      %85 = vector.extract_strided_slice %70 {offsets = [0, 1, 0], sizes = [4, 8, 16], strides = [1, 1, 1]} : vector<4x12x16xf32> to vector<4x8x16xf32>
      %86 = vector.shape_cast %84 : vector<8x16xf32> to vector<1x8x16xf32>
      %87 = vector.broadcast %86 : vector<1x8x16xf32> to vector<4x8x16xf32>
      %88 = arith.mulf %85, %87 : vector<4x8x16xf32>
      %89 = arith.addf %79, %88 : vector<4x8x16xf32>
      %90 = arith.addf %80, %84 : vector<8x16xf32>
      %c0_35 = arith.constant 0 : index
      %c2_36 = arith.constant 2 : index
      %c1_37 = arith.constant 1 : index
      %91 = arith.index_cast %13 : i32 to index
      %c0_38 = arith.constant 0 : index
      %92 = vector.load %arg3[%c0_35, %c2_36, %c1_37, %91, %c0_38] : memref<1x5x5x16x16xbf16, #tpu.memory_space<vmem>>, vector<1x1x1x8x16xbf16>
      %93 = vector.shape_cast %92 : vector<1x1x1x8x16xbf16> to vector<8x16xbf16>
      %94 = arith.extf %93 : vector<8x16xbf16> to vector<8x16xf32>
      %95 = vector.extract_strided_slice %70 {offsets = [0, 2, 0], sizes = [4, 8, 16], strides = [1, 1, 1]} : vector<4x12x16xf32> to vector<4x8x16xf32>
      %96 = vector.shape_cast %94 : vector<8x16xf32> to vector<1x8x16xf32>
      %97 = vector.broadcast %96 : vector<1x8x16xf32> to vector<4x8x16xf32>
      %98 = arith.mulf %95, %97 : vector<4x8x16xf32>
      %99 = arith.addf %89, %98 : vector<4x8x16xf32>
      %100 = arith.addf %90, %94 : vector<8x16xf32>
      %c0_39 = arith.constant 0 : index
      %c3_40 = arith.constant 3 : index
      %c1_41 = arith.constant 1 : index
      %101 = arith.index_cast %13 : i32 to index
      %c0_42 = arith.constant 0 : index
      %102 = vector.load %arg3[%c0_39, %c3_40, %c1_41, %101, %c0_42] : memref<1x5x5x16x16xbf16, #tpu.memory_space<vmem>>, vector<1x1x1x8x16xbf16>
      %103 = vector.shape_cast %102 : vector<1x1x1x8x16xbf16> to vector<8x16xbf16>
      %104 = arith.extf %103 : vector<8x16xbf16> to vector<8x16xf32>
      %105 = vector.extract_strided_slice %70 {offsets = [0, 3, 0], sizes = [4, 8, 16], strides = [1, 1, 1]} : vector<4x12x16xf32> to vector<4x8x16xf32>
      %106 = vector.shape_cast %104 : vector<8x16xf32> to vector<1x8x16xf32>
      %107 = vector.broadcast %106 : vector<1x8x16xf32> to vector<4x8x16xf32>
      %108 = arith.mulf %105, %107 : vector<4x8x16xf32>
      %109 = arith.addf %99, %108 : vector<4x8x16xf32>
      %110 = arith.addf %100, %104 : vector<8x16xf32>
      %c0_43 = arith.constant 0 : index
      %c4_44 = arith.constant 4 : index
      %c1_45 = arith.constant 1 : index
      %111 = arith.index_cast %13 : i32 to index
      %c0_46 = arith.constant 0 : index
      %112 = vector.load %arg3[%c0_43, %c4_44, %c1_45, %111, %c0_46] : memref<1x5x5x16x16xbf16, #tpu.memory_space<vmem>>, vector<1x1x1x8x16xbf16>
      %113 = vector.shape_cast %112 : vector<1x1x1x8x16xbf16> to vector<8x16xbf16>
      %114 = arith.extf %113 : vector<8x16xbf16> to vector<8x16xf32>
      %115 = vector.extract_strided_slice %70 {offsets = [0, 4, 0], sizes = [4, 8, 16], strides = [1, 1, 1]} : vector<4x12x16xf32> to vector<4x8x16xf32>
      %116 = vector.shape_cast %114 : vector<8x16xf32> to vector<1x8x16xf32>
      %117 = vector.broadcast %116 : vector<1x8x16xf32> to vector<4x8x16xf32>
      %118 = arith.mulf %115, %117 : vector<4x8x16xf32>
      %119 = arith.addf %109, %118 : vector<4x8x16xf32>
      %120 = arith.addf %110, %114 : vector<8x16xf32>
      %121 = vector.extract_strided_slice %16 {offsets = [0, 0, 2], sizes = [4, 12, 16], strides = [1, 1, 1]} : vector<4x12x20xf32> to vector<4x12x16xf32>
      %c0_47 = arith.constant 0 : index
      %c0_48 = arith.constant 0 : index
      %c2_49 = arith.constant 2 : index
      %122 = arith.index_cast %13 : i32 to index
      %c0_50 = arith.constant 0 : index
      %123 = vector.load %arg3[%c0_47, %c0_48, %c2_49, %122, %c0_50] : memref<1x5x5x16x16xbf16, #tpu.memory_space<vmem>>, vector<1x1x1x8x16xbf16>
      %124 = vector.shape_cast %123 : vector<1x1x1x8x16xbf16> to vector<8x16xbf16>
      %125 = arith.extf %124 : vector<8x16xbf16> to vector<8x16xf32>
      %126 = vector.extract_strided_slice %121 {offsets = [0, 0, 0], sizes = [4, 8, 16], strides = [1, 1, 1]} : vector<4x12x16xf32> to vector<4x8x16xf32>
      %127 = vector.shape_cast %125 : vector<8x16xf32> to vector<1x8x16xf32>
      %128 = vector.broadcast %127 : vector<1x8x16xf32> to vector<4x8x16xf32>
      %129 = arith.mulf %126, %128 : vector<4x8x16xf32>
      %130 = arith.addf %119, %129 : vector<4x8x16xf32>
      %131 = arith.addf %120, %125 : vector<8x16xf32>
      %c0_51 = arith.constant 0 : index
      %c1_52 = arith.constant 1 : index
      %c2_53 = arith.constant 2 : index
      %132 = arith.index_cast %13 : i32 to index
      %c0_54 = arith.constant 0 : index
      %133 = vector.load %arg3[%c0_51, %c1_52, %c2_53, %132, %c0_54] : memref<1x5x5x16x16xbf16, #tpu.memory_space<vmem>>, vector<1x1x1x8x16xbf16>
      %134 = vector.shape_cast %133 : vector<1x1x1x8x16xbf16> to vector<8x16xbf16>
      %135 = arith.extf %134 : vector<8x16xbf16> to vector<8x16xf32>
      %136 = vector.extract_strided_slice %121 {offsets = [0, 1, 0], sizes = [4, 8, 16], strides = [1, 1, 1]} : vector<4x12x16xf32> to vector<4x8x16xf32>
      %137 = vector.shape_cast %135 : vector<8x16xf32> to vector<1x8x16xf32>
      %138 = vector.broadcast %137 : vector<1x8x16xf32> to vector<4x8x16xf32>
      %139 = arith.mulf %136, %138 : vector<4x8x16xf32>
      %140 = arith.addf %130, %139 : vector<4x8x16xf32>
      %141 = arith.addf %131, %135 : vector<8x16xf32>
      %c0_55 = arith.constant 0 : index
      %c2_56 = arith.constant 2 : index
      %c2_57 = arith.constant 2 : index
      %142 = arith.index_cast %13 : i32 to index
      %c0_58 = arith.constant 0 : index
      %143 = vector.load %arg3[%c0_55, %c2_56, %c2_57, %142, %c0_58] : memref<1x5x5x16x16xbf16, #tpu.memory_space<vmem>>, vector<1x1x1x8x16xbf16>
      %144 = vector.shape_cast %143 : vector<1x1x1x8x16xbf16> to vector<8x16xbf16>
      %145 = arith.extf %144 : vector<8x16xbf16> to vector<8x16xf32>
      %146 = vector.extract_strided_slice %121 {offsets = [0, 2, 0], sizes = [4, 8, 16], strides = [1, 1, 1]} : vector<4x12x16xf32> to vector<4x8x16xf32>
      %147 = vector.shape_cast %145 : vector<8x16xf32> to vector<1x8x16xf32>
      %148 = vector.broadcast %147 : vector<1x8x16xf32> to vector<4x8x16xf32>
      %149 = arith.mulf %146, %148 : vector<4x8x16xf32>
      %150 = arith.addf %140, %149 : vector<4x8x16xf32>
      %151 = arith.addf %141, %145 : vector<8x16xf32>
      %c0_59 = arith.constant 0 : index
      %c3_60 = arith.constant 3 : index
      %c2_61 = arith.constant 2 : index
      %152 = arith.index_cast %13 : i32 to index
      %c0_62 = arith.constant 0 : index
      %153 = vector.load %arg3[%c0_59, %c3_60, %c2_61, %152, %c0_62] : memref<1x5x5x16x16xbf16, #tpu.memory_space<vmem>>, vector<1x1x1x8x16xbf16>
      %154 = vector.shape_cast %153 : vector<1x1x1x8x16xbf16> to vector<8x16xbf16>
      %155 = arith.extf %154 : vector<8x16xbf16> to vector<8x16xf32>
      %156 = vector.extract_strided_slice %121 {offsets = [0, 3, 0], sizes = [4, 8, 16], strides = [1, 1, 1]} : vector<4x12x16xf32> to vector<4x8x16xf32>
      %157 = vector.shape_cast %155 : vector<8x16xf32> to vector<1x8x16xf32>
      %158 = vector.broadcast %157 : vector<1x8x16xf32> to vector<4x8x16xf32>
      %159 = arith.mulf %156, %158 : vector<4x8x16xf32>
      %160 = arith.addf %150, %159 : vector<4x8x16xf32>
      %161 = arith.addf %151, %155 : vector<8x16xf32>
      %c0_63 = arith.constant 0 : index
      %c4_64 = arith.constant 4 : index
      %c2_65 = arith.constant 2 : index
      %162 = arith.index_cast %13 : i32 to index
      %c0_66 = arith.constant 0 : index
      %163 = vector.load %arg3[%c0_63, %c4_64, %c2_65, %162, %c0_66] : memref<1x5x5x16x16xbf16, #tpu.memory_space<vmem>>, vector<1x1x1x8x16xbf16>
      %164 = vector.shape_cast %163 : vector<1x1x1x8x16xbf16> to vector<8x16xbf16>
      %165 = arith.extf %164 : vector<8x16xbf16> to vector<8x16xf32>
      %166 = vector.extract_strided_slice %121 {offsets = [0, 4, 0], sizes = [4, 8, 16], strides = [1, 1, 1]} : vector<4x12x16xf32> to vector<4x8x16xf32>
      %167 = vector.shape_cast %165 : vector<8x16xf32> to vector<1x8x16xf32>
      %168 = vector.broadcast %167 : vector<1x8x16xf32> to vector<4x8x16xf32>
      %169 = arith.mulf %166, %168 : vector<4x8x16xf32>
      %170 = arith.addf %160, %169 : vector<4x8x16xf32>
      %171 = arith.addf %161, %165 : vector<8x16xf32>
      %172 = vector.extract_strided_slice %16 {offsets = [0, 0, 3], sizes = [4, 12, 16], strides = [1, 1, 1]} : vector<4x12x20xf32> to vector<4x12x16xf32>
      %c0_67 = arith.constant 0 : index
      %c0_68 = arith.constant 0 : index
      %c3_69 = arith.constant 3 : index
      %173 = arith.index_cast %13 : i32 to index
      %c0_70 = arith.constant 0 : index
      %174 = vector.load %arg3[%c0_67, %c0_68, %c3_69, %173, %c0_70] : memref<1x5x5x16x16xbf16, #tpu.memory_space<vmem>>, vector<1x1x1x8x16xbf16>
      %175 = vector.shape_cast %174 : vector<1x1x1x8x16xbf16> to vector<8x16xbf16>
      %176 = arith.extf %175 : vector<8x16xbf16> to vector<8x16xf32>
      %177 = vector.extract_strided_slice %172 {offsets = [0, 0, 0], sizes = [4, 8, 16], strides = [1, 1, 1]} : vector<4x12x16xf32> to vector<4x8x16xf32>
      %178 = vector.shape_cast %176 : vector<8x16xf32> to vector<1x8x16xf32>
      %179 = vector.broadcast %178 : vector<1x8x16xf32> to vector<4x8x16xf32>
      %180 = arith.mulf %177, %179 : vector<4x8x16xf32>
      %181 = arith.addf %170, %180 : vector<4x8x16xf32>
      %182 = arith.addf %171, %176 : vector<8x16xf32>
      %c0_71 = arith.constant 0 : index
      %c1_72 = arith.constant 1 : index
      %c3_73 = arith.constant 3 : index
      %183 = arith.index_cast %13 : i32 to index
      %c0_74 = arith.constant 0 : index
      %184 = vector.load %arg3[%c0_71, %c1_72, %c3_73, %183, %c0_74] : memref<1x5x5x16x16xbf16, #tpu.memory_space<vmem>>, vector<1x1x1x8x16xbf16>
      %185 = vector.shape_cast %184 : vector<1x1x1x8x16xbf16> to vector<8x16xbf16>
      %186 = arith.extf %185 : vector<8x16xbf16> to vector<8x16xf32>
      %187 = vector.extract_strided_slice %172 {offsets = [0, 1, 0], sizes = [4, 8, 16], strides = [1, 1, 1]} : vector<4x12x16xf32> to vector<4x8x16xf32>
      %188 = vector.shape_cast %186 : vector<8x16xf32> to vector<1x8x16xf32>
      %189 = vector.broadcast %188 : vector<1x8x16xf32> to vector<4x8x16xf32>
      %190 = arith.mulf %187, %189 : vector<4x8x16xf32>
      %191 = arith.addf %181, %190 : vector<4x8x16xf32>
      %192 = arith.addf %182, %186 : vector<8x16xf32>
      %c0_75 = arith.constant 0 : index
      %c2_76 = arith.constant 2 : index
      %c3_77 = arith.constant 3 : index
      %193 = arith.index_cast %13 : i32 to index
      %c0_78 = arith.constant 0 : index
      %194 = vector.load %arg3[%c0_75, %c2_76, %c3_77, %193, %c0_78] : memref<1x5x5x16x16xbf16, #tpu.memory_space<vmem>>, vector<1x1x1x8x16xbf16>
      %195 = vector.shape_cast %194 : vector<1x1x1x8x16xbf16> to vector<8x16xbf16>
      %196 = arith.extf %195 : vector<8x16xbf16> to vector<8x16xf32>
      %197 = vector.extract_strided_slice %172 {offsets = [0, 2, 0], sizes = [4, 8, 16], strides = [1, 1, 1]} : vector<4x12x16xf32> to vector<4x8x16xf32>
      %198 = vector.shape_cast %196 : vector<8x16xf32> to vector<1x8x16xf32>
      %199 = vector.broadcast %198 : vector<1x8x16xf32> to vector<4x8x16xf32>
      %200 = arith.mulf %197, %199 : vector<4x8x16xf32>
      %201 = arith.addf %191, %200 : vector<4x8x16xf32>
      %202 = arith.addf %192, %196 : vector<8x16xf32>
      %c0_79 = arith.constant 0 : index
      %c3_80 = arith.constant 3 : index
      %c3_81 = arith.constant 3 : index
      %203 = arith.index_cast %13 : i32 to index
      %c0_82 = arith.constant 0 : index
      %204 = vector.load %arg3[%c0_79, %c3_80, %c3_81, %203, %c0_82] : memref<1x5x5x16x16xbf16, #tpu.memory_space<vmem>>, vector<1x1x1x8x16xbf16>
      %205 = vector.shape_cast %204 : vector<1x1x1x8x16xbf16> to vector<8x16xbf16>
      %206 = arith.extf %205 : vector<8x16xbf16> to vector<8x16xf32>
      %207 = vector.extract_strided_slice %172 {offsets = [0, 3, 0], sizes = [4, 8, 16], strides = [1, 1, 1]} : vector<4x12x16xf32> to vector<4x8x16xf32>
      %208 = vector.shape_cast %206 : vector<8x16xf32> to vector<1x8x16xf32>
      %209 = vector.broadcast %208 : vector<1x8x16xf32> to vector<4x8x16xf32>
      %210 = arith.mulf %207, %209 : vector<4x8x16xf32>
      %211 = arith.addf %201, %210 : vector<4x8x16xf32>
      %212 = arith.addf %202, %206 : vector<8x16xf32>
      %c0_83 = arith.constant 0 : index
      %c4_84 = arith.constant 4 : index
      %c3_85 = arith.constant 3 : index
      %213 = arith.index_cast %13 : i32 to index
      %c0_86 = arith.constant 0 : index
      %214 = vector.load %arg3[%c0_83, %c4_84, %c3_85, %213, %c0_86] : memref<1x5x5x16x16xbf16, #tpu.memory_space<vmem>>, vector<1x1x1x8x16xbf16>
      %215 = vector.shape_cast %214 : vector<1x1x1x8x16xbf16> to vector<8x16xbf16>
      %216 = arith.extf %215 : vector<8x16xbf16> to vector<8x16xf32>
      %217 = vector.extract_strided_slice %172 {offsets = [0, 4, 0], sizes = [4, 8, 16], strides = [1, 1, 1]} : vector<4x12x16xf32> to vector<4x8x16xf32>
      %218 = vector.shape_cast %216 : vector<8x16xf32> to vector<1x8x16xf32>
      %219 = vector.broadcast %218 : vector<1x8x16xf32> to vector<4x8x16xf32>
      %220 = arith.mulf %217, %219 : vector<4x8x16xf32>
      %221 = arith.addf %211, %220 : vector<4x8x16xf32>
      %222 = arith.addf %212, %216 : vector<8x16xf32>
      %223 = vector.extract_strided_slice %16 {offsets = [0, 0, 4], sizes = [4, 12, 16], strides = [1, 1, 1]} : vector<4x12x20xf32> to vector<4x12x16xf32>
      %c0_87 = arith.constant 0 : index
      %c0_88 = arith.constant 0 : index
      %c4_89 = arith.constant 4 : index
      %224 = arith.index_cast %13 : i32 to index
      %c0_90 = arith.constant 0 : index
      %225 = vector.load %arg3[%c0_87, %c0_88, %c4_89, %224, %c0_90] : memref<1x5x5x16x16xbf16, #tpu.memory_space<vmem>>, vector<1x1x1x8x16xbf16>
      %226 = vector.shape_cast %225 : vector<1x1x1x8x16xbf16> to vector<8x16xbf16>
      %227 = arith.extf %226 : vector<8x16xbf16> to vector<8x16xf32>
      %228 = vector.extract_strided_slice %223 {offsets = [0, 0, 0], sizes = [4, 8, 16], strides = [1, 1, 1]} : vector<4x12x16xf32> to vector<4x8x16xf32>
      %229 = vector.shape_cast %227 : vector<8x16xf32> to vector<1x8x16xf32>
      %230 = vector.broadcast %229 : vector<1x8x16xf32> to vector<4x8x16xf32>
      %231 = arith.mulf %228, %230 : vector<4x8x16xf32>
      %232 = arith.addf %221, %231 : vector<4x8x16xf32>
      %233 = arith.addf %222, %227 : vector<8x16xf32>
      %c0_91 = arith.constant 0 : index
      %c1_92 = arith.constant 1 : index
      %c4_93 = arith.constant 4 : index
      %234 = arith.index_cast %13 : i32 to index
      %c0_94 = arith.constant 0 : index
      %235 = vector.load %arg3[%c0_91, %c1_92, %c4_93, %234, %c0_94] : memref<1x5x5x16x16xbf16, #tpu.memory_space<vmem>>, vector<1x1x1x8x16xbf16>
      %236 = vector.shape_cast %235 : vector<1x1x1x8x16xbf16> to vector<8x16xbf16>
      %237 = arith.extf %236 : vector<8x16xbf16> to vector<8x16xf32>
      %238 = vector.extract_strided_slice %223 {offsets = [0, 1, 0], sizes = [4, 8, 16], strides = [1, 1, 1]} : vector<4x12x16xf32> to vector<4x8x16xf32>
      %239 = vector.shape_cast %237 : vector<8x16xf32> to vector<1x8x16xf32>
      %240 = vector.broadcast %239 : vector<1x8x16xf32> to vector<4x8x16xf32>
      %241 = arith.mulf %238, %240 : vector<4x8x16xf32>
      %242 = arith.addf %232, %241 : vector<4x8x16xf32>
      %243 = arith.addf %233, %237 : vector<8x16xf32>
      %c0_95 = arith.constant 0 : index
      %c2_96 = arith.constant 2 : index
      %c4_97 = arith.constant 4 : index
      %244 = arith.index_cast %13 : i32 to index
      %c0_98 = arith.constant 0 : index
      %245 = vector.load %arg3[%c0_95, %c2_96, %c4_97, %244, %c0_98] : memref<1x5x5x16x16xbf16, #tpu.memory_space<vmem>>, vector<1x1x1x8x16xbf16>
      %246 = vector.shape_cast %245 : vector<1x1x1x8x16xbf16> to vector<8x16xbf16>
      %247 = arith.extf %246 : vector<8x16xbf16> to vector<8x16xf32>
      %248 = vector.extract_strided_slice %223 {offsets = [0, 2, 0], sizes = [4, 8, 16], strides = [1, 1, 1]} : vector<4x12x16xf32> to vector<4x8x16xf32>
      %249 = vector.shape_cast %247 : vector<8x16xf32> to vector<1x8x16xf32>
      %250 = vector.broadcast %249 : vector<1x8x16xf32> to vector<4x8x16xf32>
      %251 = arith.mulf %248, %250 : vector<4x8x16xf32>
      %252 = arith.addf %242, %251 : vector<4x8x16xf32>
      %253 = arith.addf %243, %247 : vector<8x16xf32>
      %c0_99 = arith.constant 0 : index
      %c3_100 = arith.constant 3 : index
      %c4_101 = arith.constant 4 : index
      %254 = arith.index_cast %13 : i32 to index
      %c0_102 = arith.constant 0 : index
      %255 = vector.load %arg3[%c0_99, %c3_100, %c4_101, %254, %c0_102] : memref<1x5x5x16x16xbf16, #tpu.memory_space<vmem>>, vector<1x1x1x8x16xbf16>
      %256 = vector.shape_cast %255 : vector<1x1x1x8x16xbf16> to vector<8x16xbf16>
      %257 = arith.extf %256 : vector<8x16xbf16> to vector<8x16xf32>
      %258 = vector.extract_strided_slice %223 {offsets = [0, 3, 0], sizes = [4, 8, 16], strides = [1, 1, 1]} : vector<4x12x16xf32> to vector<4x8x16xf32>
      %259 = vector.shape_cast %257 : vector<8x16xf32> to vector<1x8x16xf32>
      %260 = vector.broadcast %259 : vector<1x8x16xf32> to vector<4x8x16xf32>
      %261 = arith.mulf %258, %260 : vector<4x8x16xf32>
      %262 = arith.addf %252, %261 : vector<4x8x16xf32>
      %263 = arith.addf %253, %257 : vector<8x16xf32>
      %c0_103 = arith.constant 0 : index
      %c4_104 = arith.constant 4 : index
      %c4_105 = arith.constant 4 : index
      %264 = arith.index_cast %13 : i32 to index
      %c0_106 = arith.constant 0 : index
      %265 = vector.load %arg3[%c0_103, %c4_104, %c4_105, %264, %c0_106] : memref<1x5x5x16x16xbf16, #tpu.memory_space<vmem>>, vector<1x1x1x8x16xbf16>
      %266 = vector.shape_cast %265 : vector<1x1x1x8x16xbf16> to vector<8x16xbf16>
      %267 = arith.extf %266 : vector<8x16xbf16> to vector<8x16xf32>
      %268 = vector.extract_strided_slice %223 {offsets = [0, 4, 0], sizes = [4, 8, 16], strides = [1, 1, 1]} : vector<4x12x16xf32> to vector<4x8x16xf32>
      %269 = vector.shape_cast %267 : vector<8x16xf32> to vector<1x8x16xf32>
      %270 = vector.broadcast %269 : vector<1x8x16xf32> to vector<4x8x16xf32>
      %271 = arith.mulf %268, %270 : vector<4x8x16xf32>
      %272 = arith.addf %262, %271 : vector<4x8x16xf32>
      %273 = arith.addf %263, %267 : vector<8x16xf32>
      %c0_107 = arith.constant 0 : index
      %c0_108 = arith.constant 0 : index
      %274 = arith.index_cast %13 : i32 to index
      %c0_109 = arith.constant 0 : index
      %275 = vector.load %arg1[%c0_107, %c0_108, %274, %c0_109] : memref<1x4x16x16xf32, #tpu.memory_space<vmem>>, vector<1x4x8x16xf32>
      %276 = vector.shape_cast %275 : vector<1x4x8x16xf32> to vector<4x8x16xf32>
      %277 = arith.mulf %272, %276 : vector<4x8x16xf32>
      %278 = vector.shape_cast %273 : vector<8x16xf32> to vector<1x8x16xf32>
      %279 = vector.broadcast %278 : vector<1x8x16xf32> to vector<4x8x16xf32>
      %280 = arith.mulf %279, %276 : vector<4x8x16xf32>
      %cst_110 = arith.constant dense<0.000000e+00> : vector<4x8xf32>
      %281 = vector.multi_reduction <add>, %277, %cst_110 [2] : vector<4x8x16xf32> to vector<4x8xf32>
      %cst_111 = arith.constant dense<0.000000e+00> : vector<4xf32>
      %282 = vector.multi_reduction <add>, %281, %cst_111 [1] : vector<4x8xf32> to vector<4xf32>
      %283 = vector.shape_cast %282 : vector<4xf32> to vector<4x1xf32>
      %284 = arith.addf %arg6, %283 : vector<4x1xf32>
      %cst_112 = arith.constant dense<0.000000e+00> : vector<4x8xf32>
      %285 = vector.multi_reduction <add>, %280, %cst_112 [2] : vector<4x8x16xf32> to vector<4x8xf32>
      %cst_113 = arith.constant dense<0.000000e+00> : vector<4xf32>
      %286 = vector.multi_reduction <add>, %285, %cst_113 [1] : vector<4x8xf32> to vector<4xf32>
      %287 = vector.shape_cast %286 : vector<4xf32> to vector<4x1xf32>
      %288 = arith.addf %arg7, %287 : vector<4x1xf32>
      scf.yield %284, %288 : vector<4x1xf32>, vector<4x1xf32>
    }
    %c2_i32_1 = arith.constant 2 : i32
    %4 = arith.divf %3#0, %3#1 : vector<4x1xf32>
    %5 = vector.shape_cast %4 : vector<4x1xf32> to vector<1x4x1xf32>
    %cst_2 = arith.constant dense<0.000000e+00> : vector<1xf32>
    %6 = vector.multi_reduction <add>, %5, %cst_2 [1, 2] : vector<1x4x1xf32> to vector<1xf32>
    %7 = vector.shape_cast %6 : vector<1xf32> to vector<1x1x1xf32>
    %8 = vector.extract %7[0, 0, 0] : f32 from vector<1x1x1xf32>
    %cst_3 = arith.constant 4.000000e+00 : f32
    %9 = arith.subf %cst_3, %8 : f32
    %10 = vector.broadcast %9 : f32 to vector<1x1x128xf32>
    %c0 = arith.constant 0 : index
    %c0_4 = arith.constant 0 : index
    %c0_5 = arith.constant 0 : index
    %11 = vector.load %arg4[%c0, %c0_4, %c0_5] : memref<1x1x128xf32, #tpu.memory_space<vmem>>, vector<1x1x128xf32>
    tpu.vector_store %arg4[%c0, %c0_4, %c0_5], %10 {strides = array<i32>} : memref<1x1x128xf32, #tpu.memory_space<vmem>>, vector<1x1x128xf32>,
    return
  }
  func.func @transform_0(%arg0: i32) -> (i32, i32, i32, i32) {
    %c0_i32 = arith.constant 0 : i32
    %c0_i32_0 = arith.constant 0 : i32
    %c0_i32_1 = arith.constant 0 : i32
    %c0_i32_2 = arith.constant 0 : i32
    return %arg0, %c0_i32, %c0_i32_0, %c0_i32_1 : i32, i32, i32, i32
  }
  func.func @transform_1(%arg0: i32) -> (i32, i32, i32, i32) {
    %c0_i32 = arith.constant 0 : i32
    %c0_i32_0 = arith.constant 0 : i32
    %c0_i32_1 = arith.constant 0 : i32
    %c0_i32_2 = arith.constant 0 : i32
    return %arg0, %c0_i32, %c0_i32_0, %c0_i32_1 : i32, i32, i32, i32
  }
  func.func @transform_2(%arg0: i32) -> (i32, i32, i32, i32, i32) {
    %c0_i32 = arith.constant 0 : i32
    %c0_i32_0 = arith.constant 0 : i32
    %c0_i32_1 = arith.constant 0 : i32
    %c0_i32_2 = arith.constant 0 : i32
    %c0_i32_3 = arith.constant 0 : i32
    return %arg0, %c0_i32, %c0_i32_0, %c0_i32_1, %c0_i32_2 : i32, i32, i32, i32, i32
  }
  func.func @transform_3(%arg0: i32) -> (i32, i32, i32) {
    %c0_i32 = arith.constant 0 : i32
    %c0_i32_0 = arith.constant 0 : i32
    %c0_i32_1 = arith.constant 0 : i32
    return %arg0, %c0_i32, %c0_i32_0 : i32, i32, i32
  }
}

</mosaic_0001>

<llo_original>
// kernel: tpu_custom_call.1
$region0: #{tpu_custom_call.1}
  #allocation0 [shape = 'u32[]', space=smem, size = 0x4, offset = 0x4, fixed_abs, tag = 'smem constant byte address 0x4 - core index']
  #allocation1 [shape = 'u32[144,128]{1,0:T(1,128)}', space=vmem, size = 0x12000, scoped, tag = 'internal scratch']
  %s0 = inlined_call_operand.hbm [shape: f32[2,4,16,16], index: 0, kind: input, shape index: {}]
  %s1 = inlined_call_operand.hbm [shape: f32[2,4,20,20], index: 1, kind: input, shape index: {}]
  %s2 = inlined_call_operand.hbm [shape: bf16[2,5,5,16,16], index: 2, kind: input, shape index: {}]
  %s3 = inlined_call_operand.hbm [shape: f32[2,1,128], index: 3, kind: output, shape index: {}]
  %s4 = sld [smem:[#allocation0]]
  $region64: #{tpu_custom_call.1} parent=0
    _
  %s6 = ssub.s32 1, %s4
  %s7 = scalar_select 0, %s6, %s4
  $region1: #{tpu_custom_call.1} parent=0
    #allocation2 [shape = 'u8[65536]{0}', space=vmem, size = 0x10000, scoped, tag = 'input window, operand 0']
    #allocation3 [shape = 's32[2]{0}', space=sflag, size = 0x8, scoped, tag = 'scoped memory for tpu_custom_call.1']
    #allocation4 [shape = 's32[2]{0}', space=sflag, size = 0x8, scoped, tag = 'scoped memory for tpu_custom_call.1']
    #allocation5 [shape = 'u8[98304]{0}', space=vmem, size = 0x18000, scoped, tag = 'input window, operand 1']
    #allocation6 [shape = 's32[2]{0}', space=sflag, size = 0x8, scoped, tag = 'scoped memory for tpu_custom_call.1']
    #allocation7 [shape = 'u8[204800]{0}', space=vmem, size = 0x32000, scoped, tag = 'input window, operand 2']
    #allocation8 [shape = 'u8[1024]{0}', space=vmem, size = 0x400, scoped, tag = 'output window, operand 0']
    %8 = vsyncpa [#allocation3], 0
    %s9 = scalar_lea.sflag [#allocation3], 1
    %10 = vsyncpa %s9, 0
    %11 = vsyncpa [#allocation6], 0
    %s12 = scalar_lea.sflag [#allocation6], 1
    %13 = vsyncpa %s12, 0
    %14 = vsyncpa [#allocation4], 0
    %s15 = scalar_lea.sflag [#allocation4], 1
    %16 = vsyncpa %s15, 0
    loop: start=0, step=1, limit=4
    $region2: #{tpu_custom_call.1} parent=1 // loop_pre_header
      _
    $region3: #{tpu_custom_call.1} parent=1 // loop_header
      %s18 = sphi 0, %s22
      %p19 = scmp.ge.s32.totalorder %s18, 4
      %s28 = sphi 0, %s30
      %s31 = sphi 0, %s28
      %s32 = sphi 0, %s31
      %s48 = sphi 0, %s32
      %s54 = sphi 0, %s56
      %s57 = sphi 0, %s54
      %s58 = sphi 0, %s57
      %s74 = sphi 0, %s58
      %s80 = sphi 0, %s82
      %s83 = sphi 0, %s80
      %s84 = sphi 0, %s83
      %s100 = sphi 0, %s84
      %s106 = sphi 0, %s108
      %s109 = sphi 0, %s106
      %s110 = sphi 0, %s109
      %s126 = sphi 0, %s110
    $region4: #{tpu_custom_call.1} parent=1 // loop_header_branch
      %21 = sbr.rel (%p19) target = $region8
    $region5: #{tpu_custom_call.1} parent=1 // loop_body
      %s23 = ssub.s32 %s18, 1
      %s24 = ssub.s32 %s18, 2
      %s25 = sadd.s32 %s18, 1
      %s26 = ssub.s32 %s18, %s25
      %p27 = scmp.eq.s32.totalorder %s26, 0
      %s29 = sadd.s32 %s28, 1
      %s30 = scalar_select %p27, %s28, %s29
      %p33 = pneg %p27
      %p34 = scmp.eq.s32.totalorder %s18, 1
      %p35 = por %p33, %p34
      %p36 = scmp.ne.s32.totalorder %s28, %s31
      %p37 = scmp.eq.s32.totalorder %s18, 0
      %p38 = por %p36, %p37
      %p39 = scmp.ne.s32.totalorder %s28, %s31
      %p40 = scmp.eq.s32.totalorder %s23, 1
      %p41 = por %p39, %p40
      %p42 = scmp.ne.s32.totalorder %s31, %s32
      %p43 = scmp.eq.s32.totalorder %s23, 0
      %p44 = por %p42, %p43
      %p45 = scmp.ne.s32.totalorder %s31, %s32
      %p46 = scmp.eq.s32.totalorder %s24, 1
      %p47 = por %p45, %p46
      %p49 = scmp.ne.s32.totalorder %s32, %s48
      %p50 = scmp.eq.s32.totalorder %s24, 0
      %p51 = por %p49, %p50
      %s52 = ssub.s32 %s18, %s25
      %p53 = scmp.eq.s32.totalorder %s52, 0
      %s55 = sadd.s32 %s54, 1
      %s56 = scalar_select %p53, %s54, %s55
      %p59 = pneg %p53
      %p60 = scmp.eq.s32.totalorder %s18, 1
      %p61 = por %p59, %p60
      %p62 = scmp.ne.s32.totalorder %s54, %s57
      %p63 = scmp.eq.s32.totalorder %s18, 0
      %p64 = por %p62, %p63
      %p65 = scmp.ne.s32.totalorder %s54, %s57
      %p66 = scmp.eq.s32.totalorder %s23, 1
      %p67 = por %p65, %p66
      %p68 = scmp.ne.s32.totalorder %s57, %s58
      %p69 = scmp.eq.s32.totalorder %s23, 0
      %p70 = por %p68, %p69
      %p71 = scmp.ne.s32.totalorder %s57, %s58
      %p72 = scmp.eq.s32.totalorder %s24, 1
      %p73 = por %p71, %p72
      %p75 = scmp.ne.s32.totalorder %s58, %s74
      %p76 = scmp.eq.s32.totalorder %s24, 0
      %p77 = por %p75, %p76
      %s78 = ssub.s32 %s18, %s25
      %p79 = scmp.eq.s32.totalorder %s78, 0
      %s81 = sadd.s32 %s80, 1
      %s82 = scalar_select %p79, %s80, %s81
      %p85 = pneg %p79
      %p86 = scmp.eq.s32.totalorder %s18, 1
      %p87 = por %p85, %p86
      %p88 = scmp.ne.s32.totalorder %s80, %s83
      %p89 = scmp.eq.s32.totalorder %s18, 0
      %p90 = por %p88, %p89
      %p91 = scmp.ne.s32.totalorder %s80, %s83
      %p92 = scmp.eq.s32.totalorder %s23, 1
      %p93 = por %p91, %p92
      %p94 = scmp.ne.s32.totalorder %s83, %s84
      %p95 = scmp.eq.s32.totalorder %s23, 0
      %p96 = por %p94, %p95
      %p97 = scmp.ne.s32.totalorder %s83, %s84
      %p98 = scmp.eq.s32.totalorder %s24, 1
      %p99 = por %p97, %p98
      %p101 = scmp.ne.s32.totalorder %s84, %s100
      %p102 = scmp.eq.s32.totalorder %s24, 0
      %p103 = por %p101, %p102
      %s104 = ssub.s32 %s18, %s25
      %p105 = scmp.eq.s32.totalorder %s104, 0
      %s107 = sadd.s32 %s106, 1
      %s108 = scalar_select %p105, %s106, %s107
      %p111 = pneg %p105
      %p112 = scmp.eq.s32.totalorder %s18, 1
      %p113 = por %p111, %p112
      %p114 = scmp.ne.s32.totalorder %s106, %s109
      %p115 = scmp.eq.s32.totalorder %s18, 0
      %p116 = por %p114, %p115
      %p117 = scmp.ne.s32.totalorder %s106, %s109
      %p118 = scmp.eq.s32.totalorder %s23, 1
      %p119 = por %p117, %p118
      %p120 = scmp.ne.s32.totalorder %s109, %s110
      %p121 = scmp.eq.s32.totalorder %s23, 0
      %p122 = por %p120, %p121
      %p123 = scmp.ne.s32.totalorder %s109, %s110
      %p124 = scmp.eq.s32.totalorder %s24, 1
      %p125 = por %p123, %p124
      %p127 = scmp.ne.s32.totalorder %s110, %s126
      %p128 = scmp.eq.s32.totalorder %s24, 0
      %p129 = por %p127, %p128
      %p130 = scmp.le.s32.totalorder 1, %s18
      %p131 = scmp.lt.s32.totalorder %s18, 3
      %p132 = pnand %p130, %p131
      %p133 = pneg %p132
      // Predicated region
      $region9: #{tpu_custom_call.1} parent=5 // pred_check
        _
      $region10: #{tpu_custom_call.1} parent=5 // pred_check_branch
        %135 = sbr.rel (%p132) target = $region12
      $region11: #{tpu_custom_call.1} parent=5 // pred_region
        %s136 = ssub.s32 %s18, 1
      $region12: #{tpu_custom_call.1} parent=5 // pred_fallthru
        _
      %p137 = scmp.lt.s32.totalorder %s18, 2
      // Predicated region
      $region13: #{tpu_custom_call.1} parent=5 // pred_check
        %p138 = pneg %p137
      $region14: #{tpu_custom_call.1} parent=5 // pred_check_branch
        %140 = sbr.rel (%p138) target = $region16
      $region15: #{tpu_custom_call.1} parent=5 // pred_region
        // Predicated region
        $region17: #{tpu_custom_call.1} parent=15 // pred_check
          %p141 = pneg %p38
        $region18: #{tpu_custom_call.1} parent=15 // pred_check_branch
          %143 = sbr.rel (%p141) target = $region20
        $region19: #{tpu_custom_call.1} parent=15 // pred_region
          %s144 = sand.u32 %s28, 1
          %s145 = scalar_lea.sflag [#allocation3], %s144
          %s146 = sand.u32 %s28, 1
          %s147 = smul.addr %s146, 64
          %s148 = scalar_lea.vmem [#allocation2], %s147
          %s150 = ssub.s32 1024, 1024
          %151 = vsyncadd %s145, %s150
          %s152 = smul.addr %s18, 8
          %s153 = smul.addr %s152, 128
          %s154 = scalar_lea.hbm %s0, %s153
          %s155 = sshll.u32 %s148, 4
          %s156 = int_to_ptr.vmem [resolvable:$true] %s155
          %161 = dma.hbm_to_vmem [thread:$0]  %s154, 1024, %s156, %s145, 128, 128, 8
        $region20: #{tpu_custom_call.1} parent=15 // pred_fallthru
          _
        // Predicated region
        $region21: #{tpu_custom_call.1} parent=15 // pred_check
          %p162 = pneg %p64
        $region22: #{tpu_custom_call.1} parent=15 // pred_check_branch
          %164 = sbr.rel (%p162) target = $region24
        $region23: #{tpu_custom_call.1} parent=15 // pred_region
          %s165 = sand.u32 %s18, 1
          %s166 = scalar_lea.sflag [#allocation6], %s165
          %s167 = sand.u32 %s54, 1
          %s168 = smul.addr %s167, 96
          %s169 = scalar_lea.vmem [#allocation5], %s168
          %s171 = ssub.s32 1536, 1536
          %172 = vsyncadd %s166, %s171
          %s173 = smul.addr %s18, 12
          %s174 = smul.addr %s173, 128
          %s175 = scalar_lea.hbm %s1, %s174
          %s176 = sshll.u32 %s169, 4
          %s177 = int_to_ptr.vmem [resolvable:$true] %s176
          %182 = dma.hbm_to_vmem [thread:$0]  %s175, 1536, %s177, %s166, 128, 128, 8
        $region24: #{tpu_custom_call.1} parent=15 // pred_fallthru
          _
        // Predicated region
        $region25: #{tpu_custom_call.1} parent=15 // pred_check
          %p183 = pneg %p90
        $region26: #{tpu_custom_call.1} parent=15 // pred_check_branch
          %185 = sbr.rel (%p183) target = $region28
        $region27: #{tpu_custom_call.1} parent=15 // pred_region
          %s186 = sand.u32 %s18, 1
          %s187 = scalar_lea.sflag [#allocation6], %s186
          %s188 = sand.u32 %s80, 1
          %s189 = smul.addr %s188, 200
          %s190 = scalar_lea.vmem [#allocation7], %s189
          %s192 = ssub.s32 3200, 3200
          %193 = vsyncadd %s187, %s192
          %s194 = smul.addr %s18, 50
          %s195 = smul.addr %s194, 64
          %s196 = scalar_lea.hbm %s2, %s195
          %s197 = sshll.u32 %s190, 4
          %s198 = int_to_ptr.vmem [resolvable:$true] %s197
          %203 = dma.hbm_to_vmem [thread:$0]  %s196, 3200, %s198, %s187, 64, 64, 4
        $region28: #{tpu_custom_call.1} parent=15 // pred_fallthru
          _
      $region16: #{tpu_custom_call.1} parent=5 // pred_fallthru
        _
      %p204 = scmp.le.s32.totalorder 1, %s18
      %p205 = scmp.lt.s32.totalorder %s18, 3
      %p206 = pnand %p204, %p205
      %p207 = pneg %p206
      // Predicated region
      $region29: #{tpu_custom_call.1} parent=5 // pred_check
        _
      $region30: #{tpu_custom_call.1} parent=5 // pred_check_branch
        %209 = sbr.rel (%p206) target = $region32
      $region31: #{tpu_custom_call.1} parent=5 // pred_region
        %s210 = ssub.s32 %s18, 1
        %s211 = sand.u32 %s31, 1
        %s212 = scalar_lea.sflag [#allocation3], %s211
        %s213 = sand.u32 %s31, 1
        %s214 = smul.addr %s213, 64
        %s215 = scalar_lea.vmem [#allocation2], %s214
        // Predicated region
        $region33: #{tpu_custom_call.1} parent=31 // pred_check
          %p216 = pneg %p44
        $region34: #{tpu_custom_call.1} parent=31 // pred_check_branch
          %218 = sbr.rel (%p216) target = $region36
        $region35: #{tpu_custom_call.1} parent=31 // pred_region
          %219 = dma.done %s212, 1024
        $region36: #{tpu_custom_call.1} parent=31 // pred_fallthru
          _
        %s220 = sand.u32 %s23, 1
        %s221 = scalar_lea.sflag [#allocation6], %s220
        %s222 = sand.u32 %s57, 1
        %s223 = smul.addr %s222, 96
        %s224 = scalar_lea.vmem [#allocation5], %s223
        // Predicated region
        $region37: #{tpu_custom_call.1} parent=31 // pred_check
          %p225 = pneg %p70
        $region38: #{tpu_custom_call.1} parent=31 // pred_check_branch
          %227 = sbr.rel (%p225) target = $region40
        $region39: #{tpu_custom_call.1} parent=31 // pred_region
          %228 = dma.done %s221, 1536
        $region40: #{tpu_custom_call.1} parent=31 // pred_fallthru
          _
        %s229 = sand.u32 %s23, 1
        %s230 = scalar_lea.sflag [#allocation6], %s229
        %s231 = sand.u32 %s83, 1
        %s232 = smul.addr %s231, 200
        %s233 = scalar_lea.vmem [#allocation7], %s232
        // Predicated region
        $region41: #{tpu_custom_call.1} parent=31 // pred_check
          %p234 = pneg %p96
        $region42: #{tpu_custom_call.1} parent=31 // pred_check_branch
          %236 = sbr.rel (%p234) target = $region44
        $region43: #{tpu_custom_call.1} parent=31 // pred_region
          %237 = dma.done %s230, 3200
        $region44: #{tpu_custom_call.1} parent=31 // pred_fallthru
          _
        %s238 = sand.u32 %s31, 1
        %s239 = scalar_lea.sflag [#allocation3], %s238
        %s240 = sand.u32 %s31, 1
        %s241 = smul.addr %s240, 64
        %s242 = scalar_lea.vmem [#allocation2], %s241
        %p243 = pneg %p44
        %p244 = pneg %p41
        %s245 = sand.u32 %s23, 1
        %s246 = scalar_lea.sflag [#allocation6], %s245
        %s247 = sand.u32 %s57, 1
        %s248 = smul.addr %s247, 96
        %s249 = scalar_lea.vmem [#allocation5], %s248
        %p250 = pneg %p70
        %p251 = pneg %p67
        %s252 = sand.u32 %s23, 1
        %s253 = scalar_lea.sflag [#allocation6], %s252
        %s254 = sand.u32 %s83, 1
        %s255 = smul.addr %s254, 200
        %s256 = scalar_lea.vmem [#allocation7], %s255
        %p257 = pneg %p96
        %p258 = pneg %p93
        %p259 = pneg %p122
        %p260 = pneg %p119
        %s261 = sand.u32 %s109, 1
        %s262 = scalar_lea.sflag [#allocation4], %s261
        %s263 = sand.u32 %s109, 1
        %s264 = scalar_lea.vmem [#allocation8], %s263
        loop: start=0, step=1, limit=2
        $region45: #{tpu_custom_call.1} parent=31 // loop_pre_header
          _
        $region46: #{tpu_custom_call.1} parent=31 // loop_header
          %s266 = sphi 0, %s270
          %p267 = scmp.ge.s32.totalorder %s266, 2
          %v271 = vphi 0.0, %v1557
          %v272 = vphi 0.0, %v1597
        $region47: #{tpu_custom_call.1} parent=31 // loop_header_branch
          %269 = sbr.rel (%p267) target = $region51
        $region48: #{tpu_custom_call.1} parent=31 // loop_body
          %s273 = smul.u32 %s266, 8
          %s274 = scalar_lea.vmem %s224, %s273 [#allocation5]
          %v275 = vld [vmem:[%s274] sm:$0xff]
          %v276 = vld [vmem:[%s274 + $0x8] sm:$0xf]
          %v277 = vld [vmem:[%s274 + $0x18] sm:$0xff]
          %v278 = vld [vmem:[%s274 + $0x20] sm:$0xf]
          %v279 = vld [vmem:[%s274 + $0x30] sm:$0xff]
          %v280 = vld [vmem:[%s274 + $0x38] sm:$0xf]
          %v281 = vld [vmem:[%s274 + $0x48] sm:$0xff]
          %v282 = vld [vmem:[%s274 + $0x50] sm:$0xf]
          %s283 = sshra.s32 %s273, 3
          %s284 = sand.u32 %s273, 7
          %s285 = smul.addr %s283, 4
          %s286 = scalar_lea.vmem %s233, %s285 [#allocation7]
          %v287 = vld [vmem:[%s286] sm:$0xf]
          %v288 = vunpack.c.l.bf16 %v287
          %v289 = vmul.f32 %v275, %v288
          %v290 = vmul.f32 %v277, %v288
          %v291 = vmul.f32 %v279, %v288
          %v292 = vmul.f32 %v281, %v288
          %v293 = vadd.f32 %v289, 0.0
          %v294 = vadd.f32 %v290, 0.0
          %v295 = vadd.f32 %v291, 0.0
          %v296 = vadd.f32 %v292, 0.0
          %v297 = vadd.f32 %v288, 0.0
          %s298 = sadd.s32 %s283, 10
          %s299 = smul.addr %s298, 4
          %s300 = scalar_lea.vmem %s233, %s299 [#allocation7]
          %v301 = vld [vmem:[%s300] sm:$0xf]
          %v302 = vunpack.c.l.bf16 %v301
          %v304 = vrot.slane %v302, 7
          %v306 = vmul.f32 %v275, %v304
          %v307 = vmul.f32 %v276, %v304
          %v308 = vmul.f32 %v277, %v304
          %v309 = vmul.f32 %v278, %v304
          %v310 = vmul.f32 %v279, %v304
          %v311 = vmul.f32 %v280, %v304
          %v312 = vmul.f32 %v281, %v304
          %v313 = vmul.f32 %v282, %v304
          %vm322 = vcmask 1046528
          %v323 = vrot.slane %v306, 1
          %v324 = vrot.slane %v307, 1
          %v325 = vsel %vm322, %v323, %v324
          %v326 = vrot.slane %v308, 1
          %v327 = vrot.slane %v309, 1
          %v328 = vsel %vm322, %v326, %v327
          %v329 = vrot.slane %v310, 1
          %v330 = vrot.slane %v311, 1
          %v331 = vsel %vm322, %v329, %v330
          %v332 = vrot.slane %v312, 1
          %v333 = vrot.slane %v313, 1
          %v334 = vsel %vm322, %v332, %v333
          %v339 = vadd.f32 %v293, %v325
          %v340 = vadd.f32 %v294, %v328
          %v341 = vadd.f32 %v295, %v331
          %v342 = vadd.f32 %v296, %v334
          %v343 = vadd.f32 %v297, %v302
          %s344 = sadd.s32 %s283, 20
          %s345 = smul.addr %s344, 4
          %s346 = scalar_lea.vmem %s233, %s345 [#allocation7]
          %v347 = vld [vmem:[%s346] sm:$0xf]
          %v348 = vunpack.c.l.bf16 %v347
          %v350 = vrot.slane %v348, 6
          %v352 = vmul.f32 %v275, %v350
          %v353 = vmul.f32 %v276, %v350
          %v354 = vmul.f32 %v277, %v350
          %v355 = vmul.f32 %v278, %v350
          %v356 = vmul.f32 %v279, %v350
          %v357 = vmul.f32 %v280, %v350
          %v358 = vmul.f32 %v281, %v350
          %v359 = vmul.f32 %v282, %v350
          %vm368 = vcmask 1045504
          %v369 = vrot.slane %v352, 2
          %v370 = vrot.slane %v353, 2
          %v371 = vsel %vm368, %v369, %v370
          %v372 = vrot.slane %v354, 2
          %v373 = vrot.slane %v355, 2
          %v374 = vsel %vm368, %v372, %v373
          %v375 = vrot.slane %v356, 2
          %v376 = vrot.slane %v357, 2
          %v377 = vsel %vm368, %v375, %v376
          %v378 = vrot.slane %v358, 2
          %v379 = vrot.slane %v359, 2
          %v380 = vsel %vm368, %v378, %v379
          %v385 = vadd.f32 %v339, %v371
          %v386 = vadd.f32 %v340, %v374
          %v387 = vadd.f32 %v341, %v377
          %v388 = vadd.f32 %v342, %v380
          %v389 = vadd.f32 %v343, %v348
          %s390 = sadd.s32 %s283, 30
          %s391 = smul.addr %s390, 4
          %s392 = scalar_lea.vmem %s233, %s391 [#allocation7]
          %v393 = vld [vmem:[%s392] sm:$0xf]
          %v394 = vunpack.c.l.bf16 %v393
          %v396 = vrot.slane %v394, 5
          %v398 = vmul.f32 %v275, %v396
          %v399 = vmul.f32 %v276, %v396
          %v400 = vmul.f32 %v277, %v396
          %v401 = vmul.f32 %v278, %v396
          %v402 = vmul.f32 %v279, %v396
          %v403 = vmul.f32 %v280, %v396
          %v404 = vmul.f32 %v281, %v396
          %v405 = vmul.f32 %v282, %v396
          %vm414 = vcmask 1044480
          %v415 = vrot.slane %v398, 3
          %v416 = vrot.slane %v399, 3
          %v417 = vsel %vm414, %v415, %v416
          %v418 = vrot.slane %v400, 3
          %v419 = vrot.slane %v401, 3
          %v420 = vsel %vm414, %v418, %v419
          %v421 = vrot.slane %v402, 3
          %v422 = vrot.slane %v403, 3
          %v423 = vsel %vm414, %v421, %v422
          %v424 = vrot.slane %v404, 3
          %v425 = vrot.slane %v405, 3
          %v426 = vsel %vm414, %v424, %v425
          %v431 = vadd.f32 %v385, %v417
          %v432 = vadd.f32 %v386, %v420
          %v433 = vadd.f32 %v387, %v423
          %v434 = vadd.f32 %v388, %v426
          %v435 = vadd.f32 %v389, %v394
          %s436 = sadd.s32 %s283, 40
          %s437 = smul.addr %s436, 4
          %s438 = scalar_lea.vmem %s233, %s437 [#allocation7]
          %v439 = vld [vmem:[%s438] sm:$0xf]
          %v440 = vunpack.c.l.bf16 %v439
          %v442 = vrot.slane %v440, 4
          %v444 = vmul.f32 %v275, %v442
          %v445 = vmul.f32 %v276, %v442
          %v446 = vmul.f32 %v277, %v442
          %v447 = vmul.f32 %v278, %v442
          %v448 = vmul.f32 %v279, %v442
          %v449 = vmul.f32 %v280, %v442
          %v450 = vmul.f32 %v281, %v442
          %v451 = vmul.f32 %v282, %v442
          %vm460 = vcmask 1043456
          %v461 = vrot.slane %v444, 4
          %v462 = vrot.slane %v445, 4
          %v463 = vsel %vm460, %v461, %v462
          %v464 = vrot.slane %v446, 4
          %v465 = vrot.slane %v447, 4
          %v466 = vsel %vm460, %v464, %v465
          %v467 = vrot.slane %v448, 4
          %v468 = vrot.slane %v449, 4
          %v469 = vsel %vm460, %v467, %v468
          %v470 = vrot.slane %v450, 4
          %v471 = vrot.slane %v451, 4
          %v472 = vsel %vm460, %v470, %v471
          %v477 = vadd.f32 %v431, %v463
          %v478 = vadd.f32 %v432, %v466
          %v479 = vadd.f32 %v433, %v469
          %v480 = vadd.f32 %v434, %v472
          %v481 = vadd.f32 %v435, %v440
          %s482 = sadd.s32 %s283, 2
          %s483 = smul.addr %s482, 4
          %s484 = scalar_lea.vmem %s233, %s483 [#allocation7]
          %v485 = vld [vmem:[%s484] sm:$0xf]
          %v486 = vunpack.c.l.bf16 %v485
          %488 = vrot.lane.b32.xlu0 %v486, 1
          %v489 = vpop.permute.xlu0 %488
          %v491 = vmul.f32 %v275, %v489
          %v492 = vmul.f32 %v277, %v489
          %v493 = vmul.f32 %v279, %v489
          %v494 = vmul.f32 %v281, %v489
          %499 = vrot.lane.b32.xlu0 %v491, 127
          %v500 = vpop.permute.xlu0 %499
          %501 = vrot.lane.b32.xlu0 %v492, 127
          %v502 = vpop.permute.xlu0 %501
          %503 = vrot.lane.b32.xlu0 %v493, 127
          %v504 = vpop.permute.xlu0 %503
          %505 = vrot.lane.b32.xlu0 %v494, 127
          %v506 = vpop.permute.xlu0 %505
          %v511 = vadd.f32 %v477, %v500
          %v512 = vadd.f32 %v478, %v502
          %v513 = vadd.f32 %v479, %v504
          %v514 = vadd.f32 %v480, %v506
          %v515 = vadd.f32 %v481, %v486
          %s516 = sadd.s32 %s482, 10
          %s517 = smul.addr %s516, 4
          %s518 = scalar_lea.vmem %s233, %s517 [#allocation7]
          %v519 = vld [vmem:[%s518] sm:$0xf]
          %v520 = vunpack.c.l.bf16 %v519
          %v522 = vrot.slane %v520, 7
          %523 = vrot.lane.b32.xlu0 %v522, 1
          %v524 = vpop.permute.xlu0 %523
          %v526 = vmul.f32 %v275, %v524
          %v527 = vmul.f32 %v276, %v524
          %v528 = vmul.f32 %v277, %v524
          %v529 = vmul.f32 %v278, %v524
          %v530 = vmul.f32 %v279, %v524
          %v531 = vmul.f32 %v280, %v524
          %v532 = vmul.f32 %v281, %v524
          %v533 = vmul.f32 %v282, %v524
          %v542 = vrot.slane %v526, 1
          %v543 = vrot.slane %v527, 1
          %v544 = vsel %vm322, %v542, %v543
          %v545 = vrot.slane %v528, 1
          %v546 = vrot.slane %v529, 1
          %v547 = vsel %vm322, %v545, %v546
          %v548 = vrot.slane %v530, 1
          %v549 = vrot.slane %v531, 1
          %v550 = vsel %vm322, %v548, %v549
          %v551 = vrot.slane %v532, 1
          %v552 = vrot.slane %v533, 1
          %v553 = vsel %vm322, %v551, %v552
          %554 = vrot.lane.b32.xlu0 %v544, 127
          %v555 = vpop.permute.xlu0 %554
          %556 = vrot.lane.b32.xlu0 %v547, 127
          %v557 = vpop.permute.xlu0 %556
          %558 = vrot.lane.b32.xlu0 %v550, 127
          %v559 = vpop.permute.xlu0 %558
          %560 = vrot.lane.b32.xlu0 %v553, 127
          %v561 = vpop.permute.xlu0 %560
          %v566 = vadd.f32 %v511, %v555
          %v567 = vadd.f32 %v512, %v557
          %v568 = vadd.f32 %v513, %v559
          %v569 = vadd.f32 %v514, %v561
          %v570 = vadd.f32 %v515, %v520
          %s571 = sadd.s32 %s482, 20
          %s572 = smul.addr %s571, 4
          %s573 = scalar_lea.vmem %s233, %s572 [#allocation7]
          %v574 = vld [vmem:[%s573] sm:$0xf]
          %v575 = vunpack.c.l.bf16 %v574
          %v577 = vrot.slane %v575, 6
          %578 = vrot.lane.b32.xlu0 %v577, 1
          %v579 = vpop.permute.xlu0 %578
          %v581 = vmul.f32 %v275, %v579
          %v582 = vmul.f32 %v276, %v579
          %v583 = vmul.f32 %v277, %v579
          %v584 = vmul.f32 %v278, %v579
          %v585 = vmul.f32 %v279, %v579
          %v586 = vmul.f32 %v280, %v579
          %v587 = vmul.f32 %v281, %v579
          %v588 = vmul.f32 %v282, %v579
          %v597 = vrot.slane %v581, 2
          %v598 = vrot.slane %v582, 2
          %v599 = vsel %vm368, %v597, %v598
          %v600 = vrot.slane %v583, 2
          %v601 = vrot.slane %v584, 2
          %v602 = vsel %vm368, %v600, %v601
          %v603 = vrot.slane %v585, 2
          %v604 = vrot.slane %v586, 2
          %v605 = vsel %vm368, %v603, %v604
          %v606 = vrot.slane %v587, 2
          %v607 = vrot.slane %v588, 2
          %v608 = vsel %vm368, %v606, %v607
          %609 = vrot.lane.b32.xlu0 %v599, 127
          %v610 = vpop.permute.xlu0 %609
          %611 = vrot.lane.b32.xlu0 %v602, 127
          %v612 = vpop.permute.xlu0 %611
          %613 = vrot.lane.b32.xlu0 %v605, 127
          %v614 = vpop.permute.xlu0 %613
          %615 = vrot.lane.b32.xlu0 %v608, 127
          %v616 = vpop.permute.xlu0 %615
          %v621 = vadd.f32 %v566, %v610
          %v622 = vadd.f32 %v567, %v612
          %v623 = vadd.f32 %v568, %v614
          %v624 = vadd.f32 %v569, %v616
          %v625 = vadd.f32 %v570, %v575
          %s626 = sadd.s32 %s482, 30
          %s627 = smul.addr %s626, 4
          %s628 = scalar_lea.vmem %s233, %s627 [#allocation7]
          %v629 = vld [vmem:[%s628] sm:$0xf]
          %v630 = vunpack.c.l.bf16 %v629
          %v632 = vrot.slane %v630, 5
          %633 = vrot.lane.b32.xlu0 %v632, 1
          %v634 = vpop.permute.xlu0 %633
          %v636 = vmul.f32 %v275, %v634
          %v637 = vmul.f32 %v276, %v634
          %v638 = vmul.f32 %v277, %v634
          %v639 = vmul.f32 %v278, %v634
          %v640 = vmul.f32 %v279, %v634
          %v641 = vmul.f32 %v280, %v634
          %v642 = vmul.f32 %v281, %v634
          %v643 = vmul.f32 %v282, %v634
          %v652 = vrot.slane %v636, 3
          %v653 = vrot.slane %v637, 3
          %v654 = vsel %vm414, %v652, %v653
          %v655 = vrot.slane %v638, 3
          %v656 = vrot.slane %v639, 3
          %v657 = vsel %vm414, %v655, %v656
          %v658 = vrot.slane %v640, 3
          %v659 = vrot.slane %v641, 3
          %v660 = vsel %vm414, %v658, %v659
          %v661 = vrot.slane %v642, 3
          %v662 = vrot.slane %v643, 3
          %v663 = vsel %vm414, %v661, %v662
          %664 = vrot.lane.b32.xlu0 %v654, 127
          %v665 = vpop.permute.xlu0 %664
          %666 = vrot.lane.b32.xlu0 %v657, 127
          %v667 = vpop.permute.xlu0 %666
          %668 = vrot.lane.b32.xlu0 %v660, 127
          %v669 = vpop.permute.xlu0 %668
          %670 = vrot.lane.b32.xlu0 %v663, 127
          %v671 = vpop.permute.xlu0 %670
          %v676 = vadd.f32 %v621, %v665
          %v677 = vadd.f32 %v622, %v667
          %v678 = vadd.f32 %v623, %v669
          %v679 = vadd.f32 %v624, %v671
          %v680 = vadd.f32 %v625, %v630
          %s681 = sadd.s32 %s482, 40
          %s682 = smul.addr %s681, 4
          %s683 = scalar_lea.vmem %s233, %s682 [#allocation7]
          %v684 = vld [vmem:[%s683] sm:$0xf]
          %v685 = vunpack.c.l.bf16 %v684
          %v687 = vrot.slane %v685, 4
          %688 = vrot.lane.b32.xlu0 %v687, 1
          %v689 = vpop.permute.xlu0 %688
          %v691 = vmul.f32 %v275, %v689
          %v692 = vmul.f32 %v276, %v689
          %v693 = vmul.f32 %v277, %v689
          %v694 = vmul.f32 %v278, %v689
          %v695 = vmul.f32 %v279, %v689
          %v696 = vmul.f32 %v280, %v689
          %v697 = vmul.f32 %v281, %v689
          %v698 = vmul.f32 %v282, %v689
          %v707 = vrot.slane %v691, 4
          %v708 = vrot.slane %v692, 4
          %v709 = vsel %vm460, %v707, %v708
          %v710 = vrot.slane %v693, 4
          %v711 = vrot.slane %v694, 4
          %v712 = vsel %vm460, %v710, %v711
          %v713 = vrot.slane %v695, 4
          %v714 = vrot.slane %v696, 4
          %v715 = vsel %vm460, %v713, %v714
          %v716 = vrot.slane %v697, 4
          %v717 = vrot.slane %v698, 4
          %v718 = vsel %vm460, %v716, %v717
          %719 = vrot.lane.b32.xlu0 %v709, 127
          %v720 = vpop.permute.xlu0 %719
          %721 = vrot.lane.b32.xlu0 %v712, 127
          %v722 = vpop.permute.xlu0 %721
          %723 = vrot.lane.b32.xlu0 %v715, 127
          %v724 = vpop.permute.xlu0 %723
          %725 = vrot.lane.b32.xlu0 %v718, 127
          %v726 = vpop.permute.xlu0 %725
          %v731 = vadd.f32 %v676, %v720
          %v732 = vadd.f32 %v677, %v722
          %v733 = vadd.f32 %v678, %v724
          %v734 = vadd.f32 %v679, %v726
          %v735 = vadd.f32 %v680, %v685
          %s736 = sadd.s32 %s283, 4
          %s737 = smul.addr %s736, 4
          %s738 = scalar_lea.vmem %s233, %s737 [#allocation7]
          %v739 = vld [vmem:[%s738] sm:$0xf]
          %v740 = vunpack.c.l.bf16 %v739
          %742 = vrot.lane.b32.xlu0 %v740, 2
          %v743 = vpop.permute.xlu0 %742
          %v745 = vmul.f32 %v275, %v743
          %v746 = vmul.f32 %v277, %v743
          %v747 = vmul.f32 %v279, %v743
          %v748 = vmul.f32 %v281, %v743
          %753 = vrot.lane.b32.xlu0 %v745, 126
          %v754 = vpop.permute.xlu0 %753
          %755 = vrot.lane.b32.xlu0 %v746, 126
          %v756 = vpop.permute.xlu0 %755
          %757 = vrot.lane.b32.xlu0 %v747, 126
          %v758 = vpop.permute.xlu0 %757
          %759 = vrot.lane.b32.xlu0 %v748, 126
          %v760 = vpop.permute.xlu0 %759
          %v765 = vadd.f32 %v731, %v754
          %v766 = vadd.f32 %v732, %v756
          %v767 = vadd.f32 %v733, %v758
          %v768 = vadd.f32 %v734, %v760
          %v769 = vadd.f32 %v735, %v740
          %s770 = sadd.s32 %s736, 10
          %s771 = smul.addr %s770, 4
          %s772 = scalar_lea.vmem %s233, %s771 [#allocation7]
          %v773 = vld [vmem:[%s772] sm:$0xf]
          %v774 = vunpack.c.l.bf16 %v773
          %v776 = vrot.slane %v774, 7
          %777 = vrot.lane.b32.xlu0 %v776, 2
          %v778 = vpop.permute.xlu0 %777
          %v780 = vmul.f32 %v275, %v778
          %v781 = vmul.f32 %v276, %v778
          %v782 = vmul.f32 %v277, %v778
          %v783 = vmul.f32 %v278, %v778
          %v784 = vmul.f32 %v279, %v778
          %v785 = vmul.f32 %v280, %v778
          %v786 = vmul.f32 %v281, %v778
          %v787 = vmul.f32 %v282, %v778
          %v796 = vrot.slane %v780, 1
          %v797 = vrot.slane %v781, 1
          %v798 = vsel %vm322, %v796, %v797
          %v799 = vrot.slane %v782, 1
          %v800 = vrot.slane %v783, 1
          %v801 = vsel %vm322, %v799, %v800
          %v802 = vrot.slane %v784, 1
          %v803 = vrot.slane %v785, 1
          %v804 = vsel %vm322, %v802, %v803
          %v805 = vrot.slane %v786, 1
          %v806 = vrot.slane %v787, 1
          %v807 = vsel %vm322, %v805, %v806
          %808 = vrot.lane.b32.xlu0 %v798, 126
          %v809 = vpop.permute.xlu0 %808
          %810 = vrot.lane.b32.xlu0 %v801, 126
          %v811 = vpop.permute.xlu0 %810
          %812 = vrot.lane.b32.xlu0 %v804, 126
          %v813 = vpop.permute.xlu0 %812
          %814 = vrot.lane.b32.xlu0 %v807, 126
          %v815 = vpop.permute.xlu0 %814
          %v820 = vadd.f32 %v765, %v809
          %v821 = vadd.f32 %v766, %v811
          %v822 = vadd.f32 %v767, %v813
          %v823 = vadd.f32 %v768, %v815
          %v824 = vadd.f32 %v769, %v774
          %s825 = sadd.s32 %s736, 20
          %s826 = smul.addr %s825, 4
          %s827 = scalar_lea.vmem %s233, %s826 [#allocation7]
          %v828 = vld [vmem:[%s827] sm:$0xf]
          %v829 = vunpack.c.l.bf16 %v828
          %v831 = vrot.slane %v829, 6
          %832 = vrot.lane.b32.xlu0 %v831, 2
          %v833 = vpop.permute.xlu0 %832
          %v835 = vmul.f32 %v275, %v833
          %v836 = vmul.f32 %v276, %v833
          %v837 = vmul.f32 %v277, %v833
          %v838 = vmul.f32 %v278, %v833
          %v839 = vmul.f32 %v279, %v833
          %v840 = vmul.f32 %v280, %v833
          %v841 = vmul.f32 %v281, %v833
          %v842 = vmul.f32 %v282, %v833
          %v851 = vrot.slane %v835, 2
          %v852 = vrot.slane %v836, 2
          %v853 = vsel %vm368, %v851, %v852
          %v854 = vrot.slane %v837, 2
          %v855 = vrot.slane %v838, 2
          %v856 = vsel %vm368, %v854, %v855
          %v857 = vrot.slane %v839, 2
          %v858 = vrot.slane %v840, 2
          %v859 = vsel %vm368, %v857, %v858
          %v860 = vrot.slane %v841, 2
          %v861 = vrot.slane %v842, 2
          %v862 = vsel %vm368, %v860, %v861
          %863 = vrot.lane.b32.xlu0 %v853, 126
          %v864 = vpop.permute.xlu0 %863
          %865 = vrot.lane.b32.xlu0 %v856, 126
          %v866 = vpop.permute.xlu0 %865
          %867 = vrot.lane.b32.xlu0 %v859, 126
          %v868 = vpop.permute.xlu0 %867
          %869 = vrot.lane.b32.xlu0 %v862, 126
          %v870 = vpop.permute.xlu0 %869
          %v875 = vadd.f32 %v820, %v864
          %v876 = vadd.f32 %v821, %v866
          %v877 = vadd.f32 %v822, %v868
          %v878 = vadd.f32 %v823, %v870
          %v879 = vadd.f32 %v824, %v829
          %s880 = sadd.s32 %s736, 30
          %s881 = smul.addr %s880, 4
          %s882 = scalar_lea.vmem %s233, %s881 [#allocation7]
          %v883 = vld [vmem:[%s882] sm:$0xf]
          %v884 = vunpack.c.l.bf16 %v883
          %v886 = vrot.slane %v884, 5
          %887 = vrot.lane.b32.xlu0 %v886, 2
          %v888 = vpop.permute.xlu0 %887
          %v890 = vmul.f32 %v275, %v888
          %v891 = vmul.f32 %v276, %v888
          %v892 = vmul.f32 %v277, %v888
          %v893 = vmul.f32 %v278, %v888
          %v894 = vmul.f32 %v279, %v888
          %v895 = vmul.f32 %v280, %v888
          %v896 = vmul.f32 %v281, %v888
          %v897 = vmul.f32 %v282, %v888
          %v906 = vrot.slane %v890, 3
          %v907 = vrot.slane %v891, 3
          %v908 = vsel %vm414, %v906, %v907
          %v909 = vrot.slane %v892, 3
          %v910 = vrot.slane %v893, 3
          %v911 = vsel %vm414, %v909, %v910
          %v912 = vrot.slane %v894, 3
          %v913 = vrot.slane %v895, 3
          %v914 = vsel %vm414, %v912, %v913
          %v915 = vrot.slane %v896, 3
          %v916 = vrot.slane %v897, 3
          %v917 = vsel %vm414, %v915, %v916
          %918 = vrot.lane.b32.xlu0 %v908, 126
          %v919 = vpop.permute.xlu0 %918
          %920 = vrot.lane.b32.xlu0 %v911, 126
          %v921 = vpop.permute.xlu0 %920
          %922 = vrot.lane.b32.xlu0 %v914, 126
          %v923 = vpop.permute.xlu0 %922
          %924 = vrot.lane.b32.xlu0 %v917, 126
          %v925 = vpop.permute.xlu0 %924
          %v930 = vadd.f32 %v875, %v919
          %v931 = vadd.f32 %v876, %v921
          %v932 = vadd.f32 %v877, %v923
          %v933 = vadd.f32 %v878, %v925
          %v934 = vadd.f32 %v879, %v884
          %s935 = sadd.s32 %s736, 40
          %s936 = smul.addr %s935, 4
          %s937 = scalar_lea.vmem %s233, %s936 [#allocation7]
          %v938 = vld [vmem:[%s937] sm:$0xf]
          %v939 = vunpack.c.l.bf16 %v938
          %v941 = vrot.slane %v939, 4
          %942 = vrot.lane.b32.xlu0 %v941, 2
          %v943 = vpop.permute.xlu0 %942
          %v945 = vmul.f32 %v275, %v943
          %v946 = vmul.f32 %v276, %v943
          %v947 = vmul.f32 %v277, %v943
          %v948 = vmul.f32 %v278, %v943
          %v949 = vmul.f32 %v279, %v943
          %v950 = vmul.f32 %v280, %v943
          %v951 = vmul.f32 %v281, %v943
          %v952 = vmul.f32 %v282, %v943
          %v961 = vrot.slane %v945, 4
          %v962 = vrot.slane %v946, 4
          %v963 = vsel %vm460, %v961, %v962
          %v964 = vrot.slane %v947, 4
          %v965 = vrot.slane %v948, 4
          %v966 = vsel %vm460, %v964, %v965
          %v967 = vrot.slane %v949, 4
          %v968 = vrot.slane %v950, 4
          %v969 = vsel %vm460, %v967, %v968
          %v970 = vrot.slane %v951, 4
          %v971 = vrot.slane %v952, 4
          %v972 = vsel %vm460, %v970, %v971
          %973 = vrot.lane.b32.xlu0 %v963, 126
          %v974 = vpop.permute.xlu0 %973
          %975 = vrot.lane.b32.xlu0 %v966, 126
          %v976 = vpop.permute.xlu0 %975
          %977 = vrot.lane.b32.xlu0 %v969, 126
          %v978 = vpop.permute.xlu0 %977
          %979 = vrot.lane.b32.xlu0 %v972, 126
          %v980 = vpop.permute.xlu0 %979
          %v985 = vadd.f32 %v930, %v974
          %v986 = vadd.f32 %v931, %v976
          %v987 = vadd.f32 %v932, %v978
          %v988 = vadd.f32 %v933, %v980
          %v989 = vadd.f32 %v934, %v939
          %s990 = sadd.s32 %s283, 6
          %s991 = smul.addr %s990, 4
          %s992 = scalar_lea.vmem %s233, %s991 [#allocation7]
          %v993 = vld [vmem:[%s992] sm:$0xf]
          %v994 = vunpack.c.l.bf16 %v993
          %996 = vrot.lane.b32.xlu0 %v994, 3
          %v997 = vpop.permute.xlu0 %996
          %v999 = vmul.f32 %v275, %v997
          %v1000 = vmul.f32 %v277, %v997
          %v1001 = vmul.f32 %v279, %v997
          %v1002 = vmul.f32 %v281, %v997
          %1007 = vrot.lane.b32.xlu0 %v999, 125
          %v1008 = vpop.permute.xlu0 %1007
          %1009 = vrot.lane.b32.xlu0 %v1000, 125
          %v1010 = vpop.permute.xlu0 %1009
          %1011 = vrot.lane.b32.xlu0 %v1001, 125
          %v1012 = vpop.permute.xlu0 %1011
          %1013 = vrot.lane.b32.xlu0 %v1002, 125
          %v1014 = vpop.permute.xlu0 %1013
          %v1019 = vadd.f32 %v985, %v1008
          %v1020 = vadd.f32 %v986, %v1010
          %v1021 = vadd.f32 %v987, %v1012
          %v1022 = vadd.f32 %v988, %v1014
          %v1023 = vadd.f32 %v989, %v994
          %s1024 = sadd.s32 %s990, 10
          %s1025 = smul.addr %s1024, 4
          %s1026 = scalar_lea.vmem %s233, %s1025 [#allocation7]
          %v1027 = vld [vmem:[%s1026] sm:$0xf]
          %v1028 = vunpack.c.l.bf16 %v1027
          %v1030 = vrot.slane %v1028, 7
          %1031 = vrot.lane.b32.xlu0 %v1030, 3
          %v1032 = vpop.permute.xlu0 %1031
          %v1034 = vmul.f32 %v275, %v1032
          %v1035 = vmul.f32 %v276, %v1032
          %v1036 = vmul.f32 %v277, %v1032
          %v1037 = vmul.f32 %v278, %v1032
          %v1038 = vmul.f32 %v279, %v1032
          %v1039 = vmul.f32 %v280, %v1032
          %v1040 = vmul.f32 %v281, %v1032
          %v1041 = vmul.f32 %v282, %v1032
          %v1050 = vrot.slane %v1034, 1
          %v1051 = vrot.slane %v1035, 1
          %v1052 = vsel %vm322, %v1050, %v1051
          %v1053 = vrot.slane %v1036, 1
          %v1054 = vrot.slane %v1037, 1
          %v1055 = vsel %vm322, %v1053, %v1054
          %v1056 = vrot.slane %v1038, 1
          %v1057 = vrot.slane %v1039, 1
          %v1058 = vsel %vm322, %v1056, %v1057
          %v1059 = vrot.slane %v1040, 1
          %v1060 = vrot.slane %v1041, 1
          %v1061 = vsel %vm322, %v1059, %v1060
          %1062 = vrot.lane.b32.xlu0 %v1052, 125
          %v1063 = vpop.permute.xlu0 %1062
          %1064 = vrot.lane.b32.xlu0 %v1055, 125
          %v1065 = vpop.permute.xlu0 %1064
          %1066 = vrot.lane.b32.xlu0 %v1058, 125
          %v1067 = vpop.permute.xlu0 %1066
          %1068 = vrot.lane.b32.xlu0 %v1061, 125
          %v1069 = vpop.permute.xlu0 %1068
          %v1074 = vadd.f32 %v1019, %v1063
          %v1075 = vadd.f32 %v1020, %v1065
          %v1076 = vadd.f32 %v1021, %v1067
          %v1077 = vadd.f32 %v1022, %v1069
          %v1078 = vadd.f32 %v1023, %v1028
          %s1079 = sadd.s32 %s990, 20
          %s1080 = smul.addr %s1079, 4
          %s1081 = scalar_lea.vmem %s233, %s1080 [#allocation7]
          %v1082 = vld [vmem:[%s1081] sm:$0xf]
          %v1083 = vunpack.c.l.bf16 %v1082
          %v1085 = vrot.slane %v1083, 6
          %1086 = vrot.lane.b32.xlu0 %v1085, 3
          %v1087 = vpop.permute.xlu0 %1086
          %v1089 = vmul.f32 %v275, %v1087
          %v1090 = vmul.f32 %v276, %v1087
          %v1091 = vmul.f32 %v277, %v1087
          %v1092 = vmul.f32 %v278, %v1087
          %v1093 = vmul.f32 %v279, %v1087
          %v1094 = vmul.f32 %v280, %v1087
          %v1095 = vmul.f32 %v281, %v1087
          %v1096 = vmul.f32 %v282, %v1087
          %v1105 = vrot.slane %v1089, 2
          %v1106 = vrot.slane %v1090, 2
          %v1107 = vsel %vm368, %v1105, %v1106
          %v1108 = vrot.slane %v1091, 2
          %v1109 = vrot.slane %v1092, 2
          %v1110 = vsel %vm368, %v1108, %v1109
          %v1111 = vrot.slane %v1093, 2
          %v1112 = vrot.slane %v1094, 2
          %v1113 = vsel %vm368, %v1111, %v1112
          %v1114 = vrot.slane %v1095, 2
          %v1115 = vrot.slane %v1096, 2
          %v1116 = vsel %vm368, %v1114, %v1115
          %1117 = vrot.lane.b32.xlu0 %v1107, 125
          %v1118 = vpop.permute.xlu0 %1117
          %1119 = vrot.lane.b32.xlu0 %v1110, 125
          %v1120 = vpop.permute.xlu0 %1119
          %1121 = vrot.lane.b32.xlu0 %v1113, 125
          %v1122 = vpop.permute.xlu0 %1121
          %1123 = vrot.lane.b32.xlu0 %v1116, 125
          %v1124 = vpop.permute.xlu0 %1123
          %v1129 = vadd.f32 %v1074, %v1118
          %v1130 = vadd.f32 %v1075, %v1120
          %v1131 = vadd.f32 %v1076, %v1122
          %v1132 = vadd.f32 %v1077, %v1124
          %v1133 = vadd.f32 %v1078, %v1083
          %s1134 = sadd.s32 %s990, 30
          %s1135 = smul.addr %s1134, 4
          %s1136 = scalar_lea.vmem %s233, %s1135 [#allocation7]
          %v1137 = vld [vmem:[%s1136] sm:$0xf]
          %v1138 = vunpack.c.l.bf16 %v1137
          %v1140 = vrot.slane %v1138, 5
          %1141 = vrot.lane.b32.xlu0 %v1140, 3
          %v1142 = vpop.permute.xlu0 %1141
          %v1144 = vmul.f32 %v275, %v1142
          %v1145 = vmul.f32 %v276, %v1142
          %v1146 = vmul.f32 %v277, %v1142
          %v1147 = vmul.f32 %v278, %v1142
          %v1148 = vmul.f32 %v279, %v1142
          %v1149 = vmul.f32 %v280, %v1142
          %v1150 = vmul.f32 %v281, %v1142
          %v1151 = vmul.f32 %v282, %v1142
          %v1160 = vrot.slane %v1144, 3
          %v1161 = vrot.slane %v1145, 3
          %v1162 = vsel %vm414, %v1160, %v1161
          %v1163 = vrot.slane %v1146, 3
          %v1164 = vrot.slane %v1147, 3
          %v1165 = vsel %vm414, %v1163, %v1164
          %v1166 = vrot.slane %v1148, 3
          %v1167 = vrot.slane %v1149, 3
          %v1168 = vsel %vm414, %v1166, %v1167
          %v1169 = vrot.slane %v1150, 3
          %v1170 = vrot.slane %v1151, 3
          %v1171 = vsel %vm414, %v1169, %v1170
          %1172 = vrot.lane.b32.xlu0 %v1162, 125
          %v1173 = vpop.permute.xlu0 %1172
          %1174 = vrot.lane.b32.xlu0 %v1165, 125
          %v1175 = vpop.permute.xlu0 %1174
          %1176 = vrot.lane.b32.xlu0 %v1168, 125
          %v1177 = vpop.permute.xlu0 %1176
          %1178 = vrot.lane.b32.xlu0 %v1171, 125
          %v1179 = vpop.permute.xlu0 %1178
          %v1184 = vadd.f32 %v1129, %v1173
          %v1185 = vadd.f32 %v1130, %v1175
          %v1186 = vadd.f32 %v1131, %v1177
          %v1187 = vadd.f32 %v1132, %v1179
          %v1188 = vadd.f32 %v1133, %v1138
          %s1189 = sadd.s32 %s990, 40
          %s1190 = smul.addr %s1189, 4
          %s1191 = scalar_lea.vmem %s233, %s1190 [#allocation7]
          %v1192 = vld [vmem:[%s1191] sm:$0xf]
          %v1193 = vunpack.c.l.bf16 %v1192
          %v1195 = vrot.slane %v1193, 4
          %1196 = vrot.lane.b32.xlu0 %v1195, 3
          %v1197 = vpop.permute.xlu0 %1196
          %v1199 = vmul.f32 %v275, %v1197
          %v1200 = vmul.f32 %v276, %v1197
          %v1201 = vmul.f32 %v277, %v1197
          %v1202 = vmul.f32 %v278, %v1197
          %v1203 = vmul.f32 %v279, %v1197
          %v1204 = vmul.f32 %v280, %v1197
          %v1205 = vmul.f32 %v281, %v1197
          %v1206 = vmul.f32 %v282, %v1197
          %v1215 = vrot.slane %v1199, 4
          %v1216 = vrot.slane %v1200, 4
          %v1217 = vsel %vm460, %v1215, %v1216
          %v1218 = vrot.slane %v1201, 4
          %v1219 = vrot.slane %v1202, 4
          %v1220 = vsel %vm460, %v1218, %v1219
          %v1221 = vrot.slane %v1203, 4
          %v1222 = vrot.slane %v1204, 4
          %v1223 = vsel %vm460, %v1221, %v1222
          %v1224 = vrot.slane %v1205, 4
          %v1225 = vrot.slane %v1206, 4
          %v1226 = vsel %vm460, %v1224, %v1225
          %1227 = vrot.lane.b32.xlu0 %v1217, 125
          %v1228 = vpop.permute.xlu0 %1227
          %1229 = vrot.lane.b32.xlu0 %v1220, 125
          %v1230 = vpop.permute.xlu0 %1229
          %1231 = vrot.lane.b32.xlu0 %v1223, 125
          %v1232 = vpop.permute.xlu0 %1231
          %1233 = vrot.lane.b32.xlu0 %v1226, 125
          %v1234 = vpop.permute.xlu0 %1233
          %v1239 = vadd.f32 %v1184, %v1228
          %v1240 = vadd.f32 %v1185, %v1230
          %v1241 = vadd.f32 %v1186, %v1232
          %v1242 = vadd.f32 %v1187, %v1234
          %v1243 = vadd.f32 %v1188, %v1193
          %s1244 = sadd.s32 %s283, 8
          %s1245 = smul.addr %s1244, 4
          %s1246 = scalar_lea.vmem %s233, %s1245 [#allocation7]
          %v1247 = vld [vmem:[%s1246] sm:$0xf]
          %v1248 = vunpack.c.l.bf16 %v1247
          %1250 = vrot.lane.b32.xlu0 %v1248, 4
          %v1251 = vpop.permute.xlu0 %1250
          %v1253 = vmul.f32 %v275, %v1251
          %v1254 = vmul.f32 %v277, %v1251
          %v1255 = vmul.f32 %v279, %v1251
          %v1256 = vmul.f32 %v281, %v1251
          %1261 = vrot.lane.b32.xlu0 %v1253, 124
          %v1262 = vpop.permute.xlu0 %1261
          %1263 = vrot.lane.b32.xlu0 %v1254, 124
          %v1264 = vpop.permute.xlu0 %1263
          %1265 = vrot.lane.b32.xlu0 %v1255, 124
          %v1266 = vpop.permute.xlu0 %1265
          %1267 = vrot.lane.b32.xlu0 %v1256, 124
          %v1268 = vpop.permute.xlu0 %1267
          %v1273 = vadd.f32 %v1239, %v1262
          %v1274 = vadd.f32 %v1240, %v1264
          %v1275 = vadd.f32 %v1241, %v1266
          %v1276 = vadd.f32 %v1242, %v1268
          %v1277 = vadd.f32 %v1243, %v1248
          %s1278 = sadd.s32 %s1244, 10
          %s1279 = smul.addr %s1278, 4
          %s1280 = scalar_lea.vmem %s233, %s1279 [#allocation7]
          %v1281 = vld [vmem:[%s1280] sm:$0xf]
          %v1282 = vunpack.c.l.bf16 %v1281
          %v1284 = vrot.slane %v1282, 7
          %1285 = vrot.lane.b32.xlu0 %v1284, 4
          %v1286 = vpop.permute.xlu0 %1285
          %v1288 = vmul.f32 %v275, %v1286
          %v1289 = vmul.f32 %v276, %v1286
          %v1290 = vmul.f32 %v277, %v1286
          %v1291 = vmul.f32 %v278, %v1286
          %v1292 = vmul.f32 %v279, %v1286
          %v1293 = vmul.f32 %v280, %v1286
          %v1294 = vmul.f32 %v281, %v1286
          %v1295 = vmul.f32 %v282, %v1286
          %v1304 = vrot.slane %v1288, 1
          %v1305 = vrot.slane %v1289, 1
          %v1306 = vsel %vm322, %v1304, %v1305
          %v1307 = vrot.slane %v1290, 1
          %v1308 = vrot.slane %v1291, 1
          %v1309 = vsel %vm322, %v1307, %v1308
          %v1310 = vrot.slane %v1292, 1
          %v1311 = vrot.slane %v1293, 1
          %v1312 = vsel %vm322, %v1310, %v1311
          %v1313 = vrot.slane %v1294, 1
          %v1314 = vrot.slane %v1295, 1
          %v1315 = vsel %vm322, %v1313, %v1314
          %1316 = vrot.lane.b32.xlu0 %v1306, 124
          %v1317 = vpop.permute.xlu0 %1316
          %1318 = vrot.lane.b32.xlu0 %v1309, 124
          %v1319 = vpop.permute.xlu0 %1318
          %1320 = vrot.lane.b32.xlu0 %v1312, 124
          %v1321 = vpop.permute.xlu0 %1320
          %1322 = vrot.lane.b32.xlu0 %v1315, 124
          %v1323 = vpop.permute.xlu0 %1322
          %v1328 = vadd.f32 %v1273, %v1317
          %v1329 = vadd.f32 %v1274, %v1319
          %v1330 = vadd.f32 %v1275, %v1321
          %v1331 = vadd.f32 %v1276, %v1323
          %v1332 = vadd.f32 %v1277, %v1282
          %s1333 = sadd.s32 %s1244, 20
          %s1334 = smul.addr %s1333, 4
          %s1335 = scalar_lea.vmem %s233, %s1334 [#allocation7]
          %v1336 = vld [vmem:[%s1335] sm:$0xf]
          %v1337 = vunpack.c.l.bf16 %v1336
          %v1339 = vrot.slane %v1337, 6
          %1340 = vrot.lane.b32.xlu0 %v1339, 4
          %v1341 = vpop.permute.xlu0 %1340
          %v1343 = vmul.f32 %v275, %v1341
          %v1344 = vmul.f32 %v276, %v1341
          %v1345 = vmul.f32 %v277, %v1341
          %v1346 = vmul.f32 %v278, %v1341
          %v1347 = vmul.f32 %v279, %v1341
          %v1348 = vmul.f32 %v280, %v1341
          %v1349 = vmul.f32 %v281, %v1341
          %v1350 = vmul.f32 %v282, %v1341
          %v1359 = vrot.slane %v1343, 2
          %v1360 = vrot.slane %v1344, 2
          %v1361 = vsel %vm368, %v1359, %v1360
          %v1362 = vrot.slane %v1345, 2
          %v1363 = vrot.slane %v1346, 2
          %v1364 = vsel %vm368, %v1362, %v1363
          %v1365 = vrot.slane %v1347, 2
          %v1366 = vrot.slane %v1348, 2
          %v1367 = vsel %vm368, %v1365, %v1366
          %v1368 = vrot.slane %v1349, 2
          %v1369 = vrot.slane %v1350, 2
          %v1370 = vsel %vm368, %v1368, %v1369
          %1371 = vrot.lane.b32.xlu0 %v1361, 124
          %v1372 = vpop.permute.xlu0 %1371
          %1373 = vrot.lane.b32.xlu0 %v1364, 124
          %v1374 = vpop.permute.xlu0 %1373
          %1375 = vrot.lane.b32.xlu0 %v1367, 124
          %v1376 = vpop.permute.xlu0 %1375
          %1377 = vrot.lane.b32.xlu0 %v1370, 124
          %v1378 = vpop.permute.xlu0 %1377
          %v1383 = vadd.f32 %v1328, %v1372
          %v1384 = vadd.f32 %v1329, %v1374
          %v1385 = vadd.f32 %v1330, %v1376
          %v1386 = vadd.f32 %v1331, %v1378
          %v1387 = vadd.f32 %v1332, %v1337
          %s1388 = sadd.s32 %s1244, 30
          %s1389 = smul.addr %s1388, 4
          %s1390 = scalar_lea.vmem %s233, %s1389 [#allocation7]
          %v1391 = vld [vmem:[%s1390] sm:$0xf]
          %v1392 = vunpack.c.l.bf16 %v1391
          %v1394 = vrot.slane %v1392, 5
          %1395 = vrot.lane.b32.xlu0 %v1394, 4
          %v1396 = vpop.permute.xlu0 %1395
          %v1398 = vmul.f32 %v275, %v1396
          %v1399 = vmul.f32 %v276, %v1396
          %v1400 = vmul.f32 %v277, %v1396
          %v1401 = vmul.f32 %v278, %v1396
          %v1402 = vmul.f32 %v279, %v1396
          %v1403 = vmul.f32 %v280, %v1396
          %v1404 = vmul.f32 %v281, %v1396
          %v1405 = vmul.f32 %v282, %v1396
          %v1414 = vrot.slane %v1398, 3
          %v1415 = vrot.slane %v1399, 3
          %v1416 = vsel %vm414, %v1414, %v1415
          %v1417 = vrot.slane %v1400, 3
          %v1418 = vrot.slane %v1401, 3
          %v1419 = vsel %vm414, %v1417, %v1418
          %v1420 = vrot.slane %v1402, 3
          %v1421 = vrot.slane %v1403, 3
          %v1422 = vsel %vm414, %v1420, %v1421
          %v1423 = vrot.slane %v1404, 3
          %v1424 = vrot.slane %v1405, 3
          %v1425 = vsel %vm414, %v1423, %v1424
          %1426 = vrot.lane.b32.xlu0 %v1416, 124
          %v1427 = vpop.permute.xlu0 %1426
          %1428 = vrot.lane.b32.xlu0 %v1419, 124
          %v1429 = vpop.permute.xlu0 %1428
          %1430 = vrot.lane.b32.xlu0 %v1422, 124
          %v1431 = vpop.permute.xlu0 %1430
          %1432 = vrot.lane.b32.xlu0 %v1425, 124
          %v1433 = vpop.permute.xlu0 %1432
          %v1438 = vadd.f32 %v1383, %v1427
          %v1439 = vadd.f32 %v1384, %v1429
          %v1440 = vadd.f32 %v1385, %v1431
          %v1441 = vadd.f32 %v1386, %v1433
          %v1442 = vadd.f32 %v1387, %v1392
          %s1443 = sadd.s32 %s1244, 40
          %s1444 = smul.addr %s1443, 4
          %s1445 = scalar_lea.vmem %s233, %s1444 [#allocation7]
          %v1446 = vld [vmem:[%s1445] sm:$0xf]
          %v1447 = vunpack.c.l.bf16 %v1446
          %v1449 = vrot.slane %v1447, 4
          %1450 = vrot.lane.b32.xlu0 %v1449, 4
          %v1451 = vpop.permute.xlu0 %1450
          %v1453 = vmul.f32 %v275, %v1451
          %v1454 = vmul.f32 %v276, %v1451
          %v1455 = vmul.f32 %v277, %v1451
          %v1456 = vmul.f32 %v278, %v1451
          %v1457 = vmul.f32 %v279, %v1451
          %v1458 = vmul.f32 %v280, %v1451
          %v1459 = vmul.f32 %v281, %v1451
          %v1460 = vmul.f32 %v282, %v1451
          %v1469 = vrot.slane %v1453, 4
          %v1470 = vrot.slane %v1454, 4
          %v1471 = vsel %vm460, %v1469, %v1470
          %v1472 = vrot.slane %v1455, 4
          %v1473 = vrot.slane %v1456, 4
          %v1474 = vsel %vm460, %v1472, %v1473
          %v1475 = vrot.slane %v1457, 4
          %v1476 = vrot.slane %v1458, 4
          %v1477 = vsel %vm460, %v1475, %v1476
          %v1478 = vrot.slane %v1459, 4
          %v1479 = vrot.slane %v1460, 4
          %v1480 = vsel %vm460, %v1478, %v1479
          %1481 = vrot.lane.b32.xlu0 %v1471, 124
          %v1482 = vpop.permute.xlu0 %1481
          %1483 = vrot.lane.b32.xlu0 %v1474, 124
          %v1484 = vpop.permute.xlu0 %1483
          %1485 = vrot.lane.b32.xlu0 %v1477, 124
          %v1486 = vpop.permute.xlu0 %1485
          %1487 = vrot.lane.b32.xlu0 %v1480, 124
          %v1488 = vpop.permute.xlu0 %1487
          %v1493 = vadd.f32 %v1438, %v1482
          %v1494 = vadd.f32 %v1439, %v1484
          %v1495 = vadd.f32 %v1440, %v1486
          %v1496 = vadd.f32 %v1441, %v1488
          %v1497 = vadd.f32 %v1442, %v1447
          %s1498 = scalar_lea.vmem %s215, %s273 [#allocation2]
          %v1499 = vld [vmem:[%s1498] sm:$0xff]
          %v1500 = vld [vmem:[%s1498 + $0x10] sm:$0xff]
          %v1501 = vld [vmem:[%s1498 + $0x20] sm:$0xff]
          %v1502 = vld [vmem:[%s1498 + $0x30] sm:$0xff]
          %v1503 = vmul.f32 %v1493, %v1499
          %v1504 = vmul.f32 %v1494, %v1500
          %v1505 = vmul.f32 %v1495, %v1501
          %v1506 = vmul.f32 %v1496, %v1502
          %v1507 = vmul.f32 %v1497, %v1499
          %v1508 = vmul.f32 %v1497, %v1500
          %v1509 = vmul.f32 %v1497, %v1501
          %v1510 = vmul.f32 %v1497, %v1502
          %vm1511 = vcmask 130048
          %v1512 = vsel %vm1511, %v1503, 0.0
          %1513 = vadd.xlane.f32.xlu0 %v1512
          %v1514 = vpop.xlane.xlu0 %1513
          %v1515 = vsel %vm1511, %v1504, 0.0
          %1516 = vadd.xlane.f32.xlu0 %v1515
          %v1517 = vpop.xlane.xlu0 %1516
          %v1518 = vsel %vm1511, %v1505, 0.0
          %1519 = vadd.xlane.f32.xlu0 %v1518
          %v1520 = vpop.xlane.xlu0 %1519
          %v1521 = vsel %vm1511, %v1506, 0.0
          %1522 = vadd.xlane.f32.xlu0 %v1521
          %v1523 = vpop.xlane.xlu0 %1522
          %v1528 = vlaneseq
          %v1529 = vand.u32 %v1528, 127
          %v1530 = vlaneseq
          %v1531 = vshrl.u32 %v1530, 7
          %v1532 = vsub.s32 %v1529, %v1531
          %v1533 = vrot.slane %v1514, %v1532
          %v1534 = vlaneseq
          %v1535 = vshrl.u32 %v1534, 7
          %v1536 = vsub.s32 %v1529, %v1535
          %v1537 = vrot.slane %v1517, %v1536
          %v1538 = vlaneseq
          %v1539 = vshrl.u32 %v1538, 7
          %v1540 = vsub.s32 %v1529, %v1539
          %v1541 = vrot.slane %v1520, %v1540
          %v1542 = vlaneseq
          %v1543 = vshrl.u32 %v1542, 7
          %v1544 = vsub.s32 %v1529, %v1543
          %v1545 = vrot.slane %v1523, %v1544
          %vm1546 = vcmask 1041409
          %v1547 = vsel %vm1546, %v1537, %v1533
          %vm1548 = vcmask 1042434
          %v1549 = vsel %vm1548, %v1541, %v1547
          %vm1550 = vcmask 1043459
          %v1551 = vsel %vm1550, %v1545, %v1549
          %vm1553 = vcmask 60416
          %v1554 = vsel %vm1553, %v1551, 0.0
          %1555 = vadd.xlane.f32.xlu0 %v1554
          %v1556 = vpop.xlane.xlu0 %1555
          %v1557 = vadd.f32 %v271, %v1556
          %v1558 = vsel %vm1511, %v1507, 0.0
          %1559 = vadd.xlane.f32.xlu0 %v1558
          %v1560 = vpop.xlane.xlu0 %1559
          %v1561 = vsel %vm1511, %v1508, 0.0
          %1562 = vadd.xlane.f32.xlu0 %v1561
          %v1563 = vpop.xlane.xlu0 %1562
          %v1564 = vsel %vm1511, %v1509, 0.0
          %1565 = vadd.xlane.f32.xlu0 %v1564
          %v1566 = vpop.xlane.xlu0 %1565
          %v1567 = vsel %vm1511, %v1510, 0.0
          %1568 = vadd.xlane.f32.xlu0 %v1567
          %v1569 = vpop.xlane.xlu0 %1568
          %v1574 = vlaneseq
          %v1575 = vshrl.u32 %v1574, 7
          %v1576 = vsub.s32 %v1529, %v1575
          %v1577 = vrot.slane %v1560, %v1576
          %v1578 = vlaneseq
          %v1579 = vshrl.u32 %v1578, 7
          %v1580 = vsub.s32 %v1529, %v1579
          %v1581 = vrot.slane %v1563, %v1580
          %v1582 = vlaneseq
          %v1583 = vshrl.u32 %v1582, 7
          %v1584 = vsub.s32 %v1529, %v1583
          %v1585 = vrot.slane %v1566, %v1584
          %v1586 = vlaneseq
          %v1587 = vshrl.u32 %v1586, 7
          %v1588 = vsub.s32 %v1529, %v1587
          %v1589 = vrot.slane %v1569, %v1588
          %v1590 = vsel %vm1546, %v1581, %v1577
          %v1591 = vsel %vm1548, %v1585, %v1590
          %v1592 = vsel %vm1550, %v1589, %v1591
          %v1594 = vsel %vm1553, %v1592, 0.0
          %1595 = vadd.xlane.f32.xlu0 %v1594
          %v1596 = vpop.xlane.xlu0 %1595
          %v1597 = vadd.f32 %v272, %v1596
        $region49: #{tpu_custom_call.1} parent=31 // loop_footer
          %s270 = sadd.s32 1, %s266
        $region50: #{tpu_custom_call.1} parent=31 // loop_footer_branch
          %265 = sbr.rel target = $region46
        $region51: #{tpu_custom_call.1} parent=31 // loop_exit
          _
        %v1598 = vrcp.pop %v272
        %v1599 = vmul.f32 %v271, %v1598
        %vm1600 = vcmask 3072
        %v1601 = vsel %vm1600, %v1599, 0.0
        %1602 = vadd.xlane.f32.xlu0 %v1601
        %v1603 = vpop.xlane.xlu0 %1602
        %v1604 = vrot.slane %v1603, 4
        %v1605 = vadd.f32 %v1603, %v1604
        %v1606 = vrot.slane %v1605, 2
        %v1607 = vadd.f32 %v1605, %v1606
        %v1608 = vrot.slane %v1607, 1
        %v1609 = vadd.f32 %v1607, %v1608
        %s1610 = vtos %v1609
        %s1611 = ssub.f32 4.0, %s1610
        %v1612 = vstv %s1611
        %1613 = vst [vmem:[%s264] sm:$0x1] %v1612
        %s1614 = sand.u32 %s109, 1
        %s1615 = scalar_lea.sflag [#allocation4], %s1614
        %s1616 = sand.u32 %s109, 1
        %s1617 = scalar_lea.vmem [#allocation8], %s1616
        // Predicated region
        $region52: #{tpu_custom_call.1} parent=31 // pred_check
          %p1618 = pneg %p119
        $region53: #{tpu_custom_call.1} parent=31 // pred_check_branch
          %1620 = sbr.rel (%p1618) target = $region55
        $region54: #{tpu_custom_call.1} parent=31 // pred_region
          %s1622 = ssub.s32 16, 16
          %1623 = vsyncadd %s1615, %s1622
          %s1624 = smul.addr %s23, 16
          %s1625 = scalar_lea.hbm %s3, %s1624
          %s1627 = sshll.u32 %s1617, 4
          %s1628 = int_to_ptr.vmem [resolvable:$true] %s1627
          %1630 = dma.vmem_to_hbm [thread:$0]  %s1628, 16, %s1625, %s1615
        $region55: #{tpu_custom_call.1} parent=31 // pred_fallthru
          _
      $region32: #{tpu_custom_call.1} parent=5 // pred_fallthru
        _
      %p1631 = scmp.le.s32.totalorder 2, %s18
      // Predicated region
      $region56: #{tpu_custom_call.1} parent=5 // pred_check
        %p1632 = pneg %p1631
      $region57: #{tpu_custom_call.1} parent=5 // pred_check_branch
        %1634 = sbr.rel (%p1632) target = $region59
      $region58: #{tpu_custom_call.1} parent=5 // pred_region
        %s1635 = ssub.s32 %s18, 2
        // Predicated region
        $region60: #{tpu_custom_call.1} parent=58 // pred_check
          %p1636 = pneg %p125
        $region61: #{tpu_custom_call.1} parent=58 // pred_check_branch
          %1638 = sbr.rel (%p1636) target = $region63
        $region62: #{tpu_custom_call.1} parent=58 // pred_region
          %s1639 = sand.u32 %s110, 1
          %s1640 = scalar_lea.sflag [#allocation4], %s1639
          %s1641 = sand.u32 %s110, 1
          %s1642 = scalar_lea.vmem [#allocation8], %s1641
          %1643 = dma.done %s1640, 16
        $region63: #{tpu_custom_call.1} parent=58 // pred_fallthru
          _
      $region59: #{tpu_custom_call.1} parent=5 // pred_fallthru
        _
    $region6: #{tpu_custom_call.1} parent=1 // loop_footer
      %s22 = sadd.s32 1, %s18
    $region7: #{tpu_custom_call.1} parent=1 // loop_footer_branch
      %17 = sbr.rel target = $region3
    $region8: #{tpu_custom_call.1} parent=1 // loop_exit
      _
    %1644 = vsyncpa [#allocation3], 1
    %s1645 = scalar_lea.sflag [#allocation3], 1
    %1646 = vsyncpa %s1645, 1
    %1647 = vsyncpa [#allocation6], 1
    %s1648 = scalar_lea.sflag [#allocation6], 1
    %1649 = vsyncpa %s1648, 1
    %1650 = vsyncpa [#allocation4], 1
    %s1651 = scalar_lea.sflag [#allocation4], 1
    %1652 = vsyncpa %s1651, 1

</llo_original>
